<compile_context>
chip_gen: v6e
topology: v6e:2x2x1
jax: 0.10.0
libtpu: 0.0.40
codegen_flags: <defaults>
</compile_context>

<pallas_src>
import functools

import jax
import jax.numpy as jnp
from jax.experimental import pallas as pl
from jax.experimental.pallas import tpu as pltpu


def _softmax_last(x):
    """Numerically stable softmax over the last axis (f32 in / f32 out)."""
    m = jnp.max(x, axis=-1, keepdims=True)
    e = jnp.exp(x - m)
    return e / jnp.sum(e, axis=-1, keepdims=True)


# ----------------------------------------------------------------------------
# Fused decoder-core kernel (one batch block per grid step)
# ----------------------------------------------------------------------------
def decoder_core_kernel(
        # batch-tiled activations (bf16 unless noted)
        action_ref, feature_ref, cand_ref, cand_obj_ref, prev_h1_ref, c0_ref,
        ctx_ref, ctx_bias_ref,
        # resident weights (constant index_map)
        w_emb_ref, w_featin_ref, w_lstm_ref, b_ref, w_attin_ref,
        w_attout_ctx_ref, w_attout_h_ref, w_cand_vis_ref, w_cand_obj_ref,
        # outputs
        h1_ref, c1_ref, htilde_ref, ctxattn_ref, logit_vis_ref, objsc_ref):
    f32 = jnp.float32
    bf16 = jnp.bfloat16

    # Read the recurrent state BEFORE the aliased stores below.
    prev_h1 = prev_h1_ref[...]                         # (Bb, H) f32
    c0 = c0_ref[...]                                   # (Bb, H) f32
    prev_h1_b = prev_h1.astype(bf16)
    H = prev_h1.shape[-1]

    # --- self.embedding: tanh(Linear(angle_feat)); dropout == identity (eval).
    act_emb = jnp.tanh(jnp.dot(action_ref[...], w_emb_ref[...],
                               preferred_element_type=f32))          # (Bb, E) f32

    # --- feat_att_layer: SoftDotAttention(prev_h1, feature), no mask,
    #     output_tilde=False.  Singleton-query contractions run as f32 VPU
    #     multiply + reduce (MXU stays on the weight matmuls).
    feature_b = feature_ref[...]                                      # (Bb, V, F) bf16
    tgt_f = jnp.dot(prev_h1_b, w_featin_ref[...],
                    preferred_element_type=f32)                       # (Bb, F) f32
    s_f = jnp.sum(feature_b * tgt_f[:, None, :], axis=-1)             # (Bb, V) f32
    a_f = _softmax_last(s_f)
    attn_feat = jnp.sum(a_f[:, :, None] * feature_b, axis=1)          # (Bb, F) f32

    # --- LSTMCell([act_emb ; attn_feat], (prev_h1, c0)); one fused MXU pass
    #     over K = E + F + H.  PyTorch gate order i, f, g, o.
    x_cat = jnp.concatenate(
        [act_emb.astype(bf16), attn_feat.astype(bf16), prev_h1_b], axis=-1)
    gates = jnp.dot(x_cat, w_lstm_ref[...],
                    preferred_element_type=f32) + b_ref[...]          # (Bb, 4H) f32
    # Per-gate lane slices are free only when H % 128 == 0 (true at prod H).
    i_g = jax.nn.sigmoid(gates[:, 0 * H:1 * H])
    f_g = jax.nn.sigmoid(gates[:, 1 * H:2 * H])
    g_g = jnp.tanh(gates[:, 2 * H:3 * H])
    o_g = jax.nn.sigmoid(gates[:, 3 * H:4 * H])
    c1 = f_g * c0 + i_g * g_g
    h1 = o_g * jnp.tanh(c1)
    h1_ref[...] = h1
    c1_ref[...] = c1

    # --- attention_layer: SoftDotAttention(h1, ctx, ctx_mask), output_tilde=True.
    h1_b = h1.astype(bf16)
    ctx_b = ctx_ref[...]                                              # (Bb, S, H) bf16
    tgt_c = jnp.dot(h1_b, w_attin_ref[...], preferred_element_type=f32)   # (Bb, H)
    s_c = jnp.sum(ctx_b * tgt_c[:, None, :], axis=-1) + ctx_bias_ref[...]  # (Bb, S)
    a_c = _softmax_last(s_c)
    ctxattn_ref[...] = a_c
    w_ctx = jnp.sum(a_c[:, :, None] * ctx_b, axis=1)                  # (Bb, H) f32
    h_tilde = jnp.tanh(
        jnp.dot(w_ctx.astype(bf16), w_attout_ctx_ref[...],
                preferred_element_type=f32)
        + jnp.dot(h1_b, w_attout_h_ref[...], preferred_element_type=f32))
    htilde_ref[...] = h_tilde

    # --- candidate_att_layer.linear_in, visual half of the raw logit.
    h_tilde_b = h_tilde.astype(bf16)
    tgt_vis = jnp.dot(h_tilde_b, w_cand_vis_ref[...],
                      preferred_element_type=f32)                     # (Bb, F)
    cand_b = cand_ref[...]                                            # (Bb, C, F) bf16
    logit_vis_ref[...] = jnp.sum(cand_b * tgt_vis[:, None, :], axis=-1)    # (Bb, C)

    # --- Object half: score EVERY object of every candidate against each of
    #     the top_n query blocks.  The landmark-dependent gather in the wrapper
    #     then only picks scalars, so the huge row gather never materializes.
    cand_obj_b = cand_obj_ref[...]                                    # (Bb, C*P, D) bf16
    n_top = objsc_ref.shape[1]
    for n in range(n_top):
        t_n = jnp.dot(h_tilde_b, w_cand_obj_ref[n],
                      preferred_element_type=f32)                     # (Bb, D) f32
        objsc_ref[:, n, :] = jnp.sum(cand_obj_b * t_n[:, None, :], axis=-1)  # (Bb, C*P)


# ----------------------------------------------------------------------------
# pallas_call wrapper with batch grid + resident weights
# ----------------------------------------------------------------------------
def _decoder_core_call(action, feature, cand_feat, cand_obj, prev_h1, c_0, ctx,
                       ctx_bias, params, top_n):
    B, H = prev_h1.shape
    A = action.shape[1]
    V, F = feature.shape[1], feature.shape[2]
    C = cand_feat.shape[1]
    S = ctx.shape[1]
    K, D = cand_obj.shape[1], cand_obj.shape[2]
    E = params['w_emb'].shape[1]
    G = params['b_lstm'].shape[1]          # 4H

    # Batch tile: whole batch when small, one sublane tile (8 rows) otherwise.
    bb = B if B <= 8 else 8
    nb = pl.cdiv(B, bb)

    def bspec(rest):     # batch-tiled activation / output block
        return pl.BlockSpec((bb,) + rest, lambda b: (b,) + (0,) * len(rest))

    def wspec(shape):    # resident weight block (not re-fetched across steps)
        return pl.BlockSpec(shape, lambda b: (0,) * len(shape))

    act_inputs = (action, feature, cand_feat, cand_obj, prev_h1, c_0, ctx,
                  ctx_bias)
    weights = (params['w_emb'], params['w_featin'], params['w_lstm'],
               params['b_lstm'], params['w_attin'], params['w_attout_ctx'],
               params['w_attout_h'], params['w_cand_vis'], params['w_cand_obj'])

    in_specs = [
        bspec((A,)), bspec((V, F)), bspec((C, F)), bspec((K, D)),
        bspec((H,)), bspec((H,)), bspec((S, H)), bspec((S,)),
        wspec((A, E)), wspec((H, F)), wspec((E + F + H, G)), wspec((1, G)),
        wspec((H, H)), wspec((H, H)), wspec((H, H)), wspec((H, F)),
        wspec((top_n, H, D)),
    ]
    out_specs = (bspec((H,)), bspec((H,)), bspec((H,)), bspec((S,)),
                 bspec((C,)), bspec((top_n, K)))
    out_shape = (jax.ShapeDtypeStruct((B, H), jnp.float32),        # h_1
                 jax.ShapeDtypeStruct((B, H), jnp.float32),        # c_1
                 jax.ShapeDtypeStruct((B, H), jnp.float32),        # h_tilde
                 jax.ShapeDtypeStruct((B, S), jnp.float32),        # ctx_attn
                 jax.ShapeDtypeStruct((B, C), jnp.float32),        # logit (visual half)
                 jax.ShapeDtypeStruct((B, top_n, K), jnp.float32))  # obj scores

    # VMEM budget: resident weights + double-buffered activation/output blocks.
    weight_bytes = sum(int(w.size) * w.dtype.itemsize for w in weights)
    act_block_bytes = sum(int(x.size) * x.dtype.itemsize for x in act_inputs) * bb // B
    out_block_bytes = 4 * bb * (3 * H + S + C + top_n * K)
    vmem_limit = weight_bytes + 2 * (act_block_bytes + out_block_bytes) + (4 << 20)
    vmem_limit = int(min(max(vmem_limit, 16 << 20), 48 << 20))  # v7x: keep <=~40 MiB at prod

    cost = pl.CostEstimate(
        flops=2 * B * (A * E + H * F + 2 * V * F + (E + F + H) * G
                       + 3 * H * H + 2 * S * H + H * F + top_n * H * D
                       + C * F + top_n * K * D),
        transcendentals=B * (E + V + S + 6 * H),
        bytes_accessed=weight_bytes
        + sum(int(x.size) * x.dtype.itemsize for x in act_inputs)
        + 4 * B * (3 * H + S + C + top_n * K))

    return pl.pallas_call(
        decoder_core_kernel,
        grid=(nb,),
        out_shape=out_shape,
        in_specs=in_specs,
        out_specs=out_specs,
        # Recurrent state updated in place: prev_h1 -> h_1, c_0 -> c_1
        # (kernel reads them before the aliased stores).
        input_output_aliases={4: 0, 5: 1},
        compiler_params=pltpu.CompilerParams(
            dimension_semantics=("parallel",),
            vmem_limit_bytes=vmem_limit),
        cost_estimate=cost,
    )(*act_inputs, *weights)


# ----------------------------------------------------------------------------
# Full forward (mirrors ConfigurationLXMERTDecoder.forward, eval mode)
# ----------------------------------------------------------------------------
@functools.partial(jax.jit, static_argnames=('top_n',))
def configuration_lxmert_decoder_forward(params, action, feature, cand_feat,
                                         h_0, prev_h1, c_0, ctx, ctx_mask,
                                         candidate_obj_feat, candi_landmark,
                                         landmark_mask, sim_matrix1, top_n=3):
    del h_0, candi_landmark  # accepted for API parity; unused by the outputs
    B, C, P, D = candidate_obj_feat.shape
    bf16 = jnp.bfloat16

    # bf16 activation pre-cast (halves HBM->VMEM bytes) + additive mask bias.
    action_bf = action.astype(bf16)
    feature_bf = feature.astype(bf16)
    cand_bf = cand_feat.astype(bf16)
    ctx_bf = ctx.astype(bf16)
    cand_obj_bf = candidate_obj_feat.astype(bf16).reshape(B, C * P, D)
    ctx_bias = jnp.where(ctx_mask, -1e30, 0.0).astype(jnp.float32)

    # Hot path: one fused, batch-pipelined Pallas kernel.
    h_1, c_1, h_tilde, ctx_attn, logit_vis, obj_scores = _decoder_core_call(
        action_bf, feature_bf, cand_bf, cand_obj_bf, prev_h1, c_0, ctx_bf,
        ctx_bias, params, top_n)
    obj_scores = obj_scores.reshape(B, top_n, C, P)

    # Index-only glue in XLA.  lax.top_k keeps the lowest index among ties,
    # matching torch.sort(descending=True, stable=True)[1][:, :top_n].
    weighted = ctx_attn[:, :, None] * landmark_mask                   # (B, S, L)
    _, top_idx = jax.lax.top_k(weighted.reshape(B, -1), top_n)        # (B, top_n)
    idx_exp = jnp.broadcast_to(top_idx[:, None, :], (B, C, top_n))
    candi_sim_index = jnp.take_along_axis(sim_matrix1, idx_exp, axis=-1)  # (B, C, top_n)

    # Pick the pre-computed per-object scores (scalar gather only).
    idx_t = jnp.transpose(candi_sim_index, (0, 2, 1))[..., None]      # (B, top_n, C, 1)
    gathered = jnp.take_along_axis(obj_scores, idx_t, axis=3)[..., 0]  # (B, top_n, C)
    logit = logit_vis + jnp.sum(gathered, axis=1)

    return h_1, c_1, logit, h_tilde, ctx_attn


# ----------------------------------------------------------------------------
# Pure-JAX reference (module structure, same mixed-precision policy)
# ----------------------------------------------------------------------------
def reference_forward(params, action, feature, cand_feat, prev_h1, c_0, ctx,
                      ctx_mask, candidate_obj_feat, landmark_mask, sim_matrix1,
                      top_n=3):
    f32, bf16 = jnp.float32, jnp.bfloat16
    B, C, P, D = candidate_obj_feat.shape
    H = prev_h1.shape[-1]
    E = params['w_emb'].shape[1]
    Fdim = params['w_featin'].shape[1]

    up = lambda x: x.astype(bf16).astype(f32)                 # wrapper's bf16 quantization
    dot = lambda a, w: jnp.dot(a.astype(bf16), w, preferred_element_type=f32)

    act_emb = jnp.tanh(dot(action, params['w_emb']))
    # feat_att_layer (no mask, output_tilde=False)
    tgt_f = dot(prev_h1, params['w_featin'])
    s_f = jnp.einsum('bvf,bf->bv', up(feature), tgt_f)
    a_f = jax.nn.softmax(s_f, axis=-1)
    attn_feat = jnp.einsum('bv,bvf->bf', a_f, up(feature))
    # LSTMCell (fused weight split back into W_ih / W_hh halves)
    w_ih = params['w_lstm'][:E + Fdim]
    w_hh = params['w_lstm'][E + Fdim:]
    gates = (dot(jnp.concatenate([act_emb, attn_feat], -1), w_ih)
             + dot(prev_h1, w_hh) + params['b_lstm'])
    i_g, f_g, g_g, o_g = (gates[:, :H], gates[:, H:2 * H],
                          gates[:, 2 * H:3 * H], gates[:, 3 * H:])
    c_1 = jax.nn.sigmoid(f_g) * c_0 + jax.nn.sigmoid(i_g) * jnp.tanh(g_g)
    h_1 = jax.nn.sigmoid(o_g) * jnp.tanh(c_1)
    # attention_layer with masked_fill(-inf) as in PyTorch
    tgt_c = dot(h_1, params['w_attin'])
    s_c = jnp.einsum('bsh,bh->bs', up(ctx), tgt_c)
    s_c = jnp.where(ctx_mask, -jnp.inf, s_c)
    ctx_attn = jax.nn.softmax(s_c, axis=-1)
    w_ctx = jnp.einsum('bs,bsh->bh', ctx_attn, up(ctx))
    h_tilde = jnp.tanh(dot(w_ctx, params['w_attout_ctx'])
                       + dot(h_1, params['w_attout_h']))
    # top-N landmark-similar object gather (module path: gather rows, then dot)
    weighted = ctx_attn[:, :, None] * landmark_mask
    _, top_idx = jax.lax.top_k(weighted.reshape(B, -1), top_n)
    idx_exp = jnp.broadcast_to(top_idx[:, None, :], (B, C, top_n))
    candi_sim_index = jnp.take_along_axis(sim_matrix1, idx_exp, axis=-1)
    idx2 = jnp.broadcast_to(candi_sim_index[..., None], (B, C, top_n, D))
    candi_sim_obj = jnp.take_along_axis(up(candidate_obj_feat), idx2,
                                        axis=2).reshape(B, C, -1)
    # candidate_att_layer.linear_in, output_prob=False -> raw logit
    w_obj_mod = jnp.transpose(params['w_cand_obj'], (1, 0, 2)).reshape(H, -1)
    tgt_vis = dot(h_tilde, params['w_cand_vis'])
    tgt_obj = dot(h_tilde, w_obj_mod)
    logit = (jnp.einsum('bcf,bf->bc', up(cand_feat), tgt_vis)
             + jnp.einsum('bco,bo->bc', candi_sim_obj, tgt_obj))
    return h_1, c_1, logit, h_tilde, ctx_attn


# ----------------------------------------------------------------------------
# Deterministic parameter init (weights bf16, bias f32 2-D)
# ----------------------------------------------------------------------------
def init_params(key, angle_feat, emb, hidden, feat, obj_dim, top_n=3):
    ks = jax.random.split(key, 9)
    w = lambda k, s: jax.random.normal(k, s, jnp.float32) * 0.05
    bf = jnp.bfloat16
    return dict(
        w_emb=w(ks[0], (angle_feat, emb)).astype(bf),                  # embedding Linear
        w_featin=w(ks[1], (hidden, feat)).astype(bf),                  # feat_att.linear_in
        w_lstm=w(ks[2], (emb + feat + hidden, 4 * hidden)).astype(bf),  # [W_ih ; W_hh] fused
        b_lstm=w(ks[3], (1, 4 * hidden)),                              # b_ih + b_hh, f32 2-D
        w_attin=w(ks[4], (hidden, hidden)).astype(bf),                 # attention.linear_in
        w_attout_ctx=w(ks[5], (hidden, hidden)).astype(bf),            # attention.linear_out (ctx half)
        w_attout_h=w(ks[6], (hidden, hidden)).astype(bf),              # attention.linear_out (h half)
        w_cand_vis=w(ks[7], (hidden, feat)).astype(bf),                # candidate.linear_in (visual)
        w_cand_obj=w(ks[8], (top_n, hidden, obj_dim)).astype(bf),      # candidate.linear_in (obj, per top-n block)
    )


if __name__ == "__main__":
    # Small synthetic shapes consistent with the module's forward.
    B, ANGLE, EMB, HID = 2, 8, 16, 32
    VIEWS, FEAT = 36, 64            # FEAT plays the role of feature_size (+angle)
    SEQ, CAND = 8, 4
    OBJ_PER, OBJ_DIM = 6, 32        # OBJ_DIM stands in for the hard-coded 2048
    LANDMARK, CONFIG, TOP_N = 5, 2, 3

    key = jax.random.PRNGKey(0)
    ks = jax.random.split(key, 12)

    params = init_params(ks[0], ANGLE, EMB, HID, FEAT, OBJ_DIM, top_n=TOP_N)

    action = jax.random.normal(ks[1], (B, ANGLE), jnp.float32)
    feature = jax.random.normal(ks[2], (B, VIEWS, FEAT), jnp.float32)
    cand_feat = jax.random.normal(ks[3], (B, CAND, FEAT), jnp.float32)
    h_0 = jax.random.normal(ks[4], (B, HID), jnp.float32)
    prev_h1 = jax.random.normal(ks[5], (B, HID), jnp.float32)
    c_0 = jax.random.normal(ks[6], (B, HID), jnp.float32)
    ctx = jax.random.normal(ks[7], (B, SEQ, HID), jnp.float32)
    # boolean mask, True = masked (as in masked_fill_)
    ctx_mask = jnp.arange(SEQ)[None, :] >= jnp.array([[6], [8]])
    candidate_obj_feat = jax.random.normal(ks[8], (B, CAND, OBJ_PER, OBJ_DIM),
                                           jnp.float32)
    candi_landmark = jax.random.normal(ks[9], (B, CONFIG, LANDMARK, 4), jnp.float32)
    landmark_mask = (jax.random.uniform(ks[10], (B, SEQ, LANDMARK)) > 0.3
                     ).astype(jnp.float32)
    sim_matrix1 = jax.random.randint(ks[11], (B, CAND, SEQ * LANDMARK), 0, OBJ_PER)

    outs = configuration_lxmert_decoder_forward(
        params, action, feature, cand_feat, h_0, prev_h1, c_0, ctx, ctx_mask,
        candidate_obj_feat, candi_landmark, landmark_mask, sim_matrix1,
        top_n=TOP_N)
    outs = jax.block_until_ready(outs)

    refs = reference_forward(
        params, action, feature, cand_feat, prev_h1, c_0, ctx, ctx_mask,
        candidate_obj_feat, landmark_mask, sim_matrix1, top_n=TOP_N)

    names = ["h_1", "c_1", "logit", "h_tilde", "ctx_attn"]
    for name, a, b in zip(names, outs, refs):
        assert a.shape == b.shape, (name, a.shape, b.shape)
        assert bool(jnp.allclose(a, b, atol=2e-3, rtol=2e-3)), f"mismatch in {name}"

    print("KERNEL_OK")
</pallas_src>

<mosaic_0001>
module attributes {stable_mosaic.version = 11 : i64} {
  func.func @decoder_core_kernel(%arg0: i32, %arg1: memref<2x8xbf16, #tpu.memory_space<vmem>>, %arg2: memref<2x36x64xbf16, #tpu.memory_space<vmem>>, %arg3: memref<2x4x64xbf16, #tpu.memory_space<vmem>>, %arg4: memref<2x24x32xbf16, #tpu.memory_space<vmem>>, %arg5: memref<2x32xf32, #tpu.memory_space<vmem>>, %arg6: memref<2x32xf32, #tpu.memory_space<vmem>>, %arg7: memref<2x8x32xbf16, #tpu.memory_space<vmem>>, %arg8: memref<2x8xf32, #tpu.memory_space<vmem>>, %arg9: memref<8x16xbf16, #tpu.memory_space<vmem>>, %arg10: memref<32x64xbf16, #tpu.memory_space<vmem>>, %arg11: memref<112x128xbf16, #tpu.memory_space<vmem>>, %arg12: memref<1x128xf32, #tpu.memory_space<vmem>>, %arg13: memref<32x32xbf16, #tpu.memory_space<vmem>>, %arg14: memref<32x32xbf16, #tpu.memory_space<vmem>>, %arg15: memref<32x32xbf16, #tpu.memory_space<vmem>>, %arg16: memref<32x64xbf16, #tpu.memory_space<vmem>>, %arg17: memref<3x32x32xbf16, #tpu.memory_space<vmem>>, %arg18: memref<2x32xf32, #tpu.memory_space<vmem>>, %arg19: memref<2x32xf32, #tpu.memory_space<vmem>>, %arg20: memref<2x32xf32, #tpu.memory_space<vmem>>, %arg21: memref<2x8xf32, #tpu.memory_space<vmem>>, %arg22: memref<2x4xf32, #tpu.memory_space<vmem>>, %arg23: memref<2x3x24xf32, #tpu.memory_space<vmem>>) attributes {dimension_semantics = [#tpu.dimension_semantics<parallel>], iteration_bounds = array<i64: 1>, scalar_prefetch = 0 : i64, scratch_operands = 0 : i64, tpu.core_type = #tpu.core_type<tc>, window_params = [{transform_indices = @transform_0, window_bounds = array<i64: 2, 8>}, {transform_indices = @transform_1, window_bounds = array<i64: 2, 36, 64>}, {transform_indices = @transform_2, window_bounds = array<i64: 2, 4, 64>}, {transform_indices = @transform_3, window_bounds = array<i64: 2, 24, 32>}, {transform_indices = @transform_4, window_bounds = array<i64: 2, 32>}, {transform_indices = @transform_5, window_bounds = array<i64: 2, 32>}, {transform_indices = @transform_6, window_bounds = array<i64: 2, 8, 32>}, {transform_indices = @transform_7, window_bounds = array<i64: 2, 8>}, {pipeline_mode = #tpu.pipeline_mode<synchronous>, transform_indices = @transform_8, window_bounds = array<i64: 8, 16>}, {pipeline_mode = #tpu.pipeline_mode<synchronous>, transform_indices = @transform_9, window_bounds = array<i64: 32, 64>}, {pipeline_mode = #tpu.pipeline_mode<synchronous>, transform_indices = @transform_10, window_bounds = array<i64: 112, 128>}, {pipeline_mode = #tpu.pipeline_mode<synchronous>, transform_indices = @transform_11, window_bounds = array<i64: 1, 128>}, {pipeline_mode = #tpu.pipeline_mode<synchronous>, transform_indices = @transform_12, window_bounds = array<i64: 32, 32>}, {pipeline_mode = #tpu.pipeline_mode<synchronous>, transform_indices = @transform_13, window_bounds = array<i64: 32, 32>}, {pipeline_mode = #tpu.pipeline_mode<synchronous>, transform_indices = @transform_14, window_bounds = array<i64: 32, 32>}, {pipeline_mode = #tpu.pipeline_mode<synchronous>, transform_indices = @transform_15, window_bounds = array<i64: 32, 64>}, {pipeline_mode = #tpu.pipeline_mode<synchronous>, transform_indices = @transform_16, window_bounds = array<i64: 3, 32, 32>}, {transform_indices = @transform_17, window_bounds = array<i64: 2, 32>}, {transform_indices = @transform_18, window_bounds = array<i64: 2, 32>}, {transform_indices = @transform_19, window_bounds = array<i64: 2, 32>}, {transform_indices = @transform_20, window_bounds = array<i64: 2, 8>}, {transform_indices = @transform_21, window_bounds = array<i64: 2, 4>}, {transform_indices = @transform_22, window_bounds = array<i64: 2, 3, 24>}]} {
    %c0 = arith.constant 0 : index
    %c0_0 = arith.constant 0 : index
    %0 = vector.load %arg5[%c0, %c0_0] : memref<2x32xf32, #tpu.memory_space<vmem>>, vector<2x32xf32>
    %c0_1 = arith.constant 0 : index
    %c0_2 = arith.constant 0 : index
    %1 = vector.load %arg6[%c0_1, %c0_2] : memref<2x32xf32, #tpu.memory_space<vmem>>, vector<2x32xf32>
    %2 = arith.truncf %0 : vector<2x32xf32> to vector<2x32xbf16>
    %c0_3 = arith.constant 0 : index
    %c0_4 = arith.constant 0 : index
    %3 = vector.load %arg1[%c0_3, %c0_4] : memref<2x8xbf16, #tpu.memory_space<vmem>>, vector<2x8xbf16>
    %c0_5 = arith.constant 0 : index
    %c0_6 = arith.constant 0 : index
    %4 = vector.load %arg9[%c0_5, %c0_6] : memref<8x16xbf16, #tpu.memory_space<vmem>>, vector<8x16xbf16>
    %cst = arith.constant dense<0.000000e+00> : vector<2x16xf32>
    %5 = tpu.matmul %3, %4, %cst {dimension_numbers = #tpu.dot_dimension_numbers<[1], [0], [0], [1], [0, 0, 1, 1], [], []>} : vector<2x8xbf16>, vector<8x16xbf16>, vector<2x16xf32> -> vector<2x16xf32>
    %6 = math.tanh %5 : vector<2x16xf32>
    %c0_7 = arith.constant 0 : index
    %c0_8 = arith.constant 0 : index
    %c0_9 = arith.constant 0 : index
    %7 = vector.load %arg2[%c0_7, %c0_8, %c0_9] : memref<2x36x64xbf16, #tpu.memory_space<vmem>>, vector<2x36x64xbf16>
    %c0_10 = arith.constant 0 : index
    %c0_11 = arith.constant 0 : index
    %8 = vector.load %arg10[%c0_10, %c0_11] : memref<32x64xbf16, #tpu.memory_space<vmem>>, vector<32x64xbf16>
    %cst_12 = arith.constant dense<0.000000e+00> : vector<2x64xf32>
    %9 = tpu.matmul %2, %8, %cst_12 {dimension_numbers = #tpu.dot_dimension_numbers<[1], [0], [0], [1], [0, 0, 1, 1], [], []>} : vector<2x32xbf16>, vector<32x64xbf16>, vector<2x64xf32> -> vector<2x64xf32>
    %10 = vector.shape_cast %9 : vector<2x64xf32> to vector<2x1x64xf32>
    %11 = arith.extf %7 : vector<2x36x64xbf16> to vector<2x36x64xf32>
    %12 = vector.broadcast %10 : vector<2x1x64xf32> to vector<2x36x64xf32>
    %13 = arith.mulf %11, %12 : vector<2x36x64xf32>
    %cst_13 = arith.constant dense<0.000000e+00> : vector<2x36xf32>
    %14 = vector.multi_reduction <add>, %13, %cst_13 [2] : vector<2x36x64xf32> to vector<2x36xf32>
    %cst_14 = arith.constant dense<0xFF800000> : vector<2xf32>
    %15 = vector.multi_reduction <maximumf>, %14, %cst_14 [1] : vector<2x36xf32> to vector<2xf32>
    %16 = vector.shape_cast %15 : vector<2xf32> to vector<2x1xf32>
    %17 = vector.broadcast %16 : vector<2x1xf32> to vector<2x36xf32>
    %18 = arith.subf %14, %17 : vector<2x36xf32>
    %19 = math.exp %18 : vector<2x36xf32>
    %cst_15 = arith.constant dense<0.000000e+00> : vector<2xf32>
    %20 = vector.multi_reduction <add>, %19, %cst_15 [1] : vector<2x36xf32> to vector<2xf32>
    %21 = vector.shape_cast %20 : vector<2xf32> to vector<2x1xf32>
    %22 = vector.broadcast %21 : vector<2x1xf32> to vector<2x36xf32>
    %23 = arith.divf %19, %22 : vector<2x36xf32>
    %24 = vector.shape_cast %23 : vector<2x36xf32> to vector<2x36x1xf32>
    %25 = arith.extf %7 : vector<2x36x64xbf16> to vector<2x36x64xf32>
    %26 = vector.broadcast %24 : vector<2x36x1xf32> to vector<2x36x64xf32>
    %27 = arith.mulf %26, %25 : vector<2x36x64xf32>
    %cst_16 = arith.constant dense<0.000000e+00> : vector<2x64xf32>
    %28 = vector.multi_reduction <add>, %27, %cst_16 [1] : vector<2x36x64xf32> to vector<2x64xf32>
    %29 = arith.truncf %6 : vector<2x16xf32> to vector<2x16xbf16>
    %30 = arith.truncf %28 : vector<2x64xf32> to vector<2x64xbf16>
    %31 = tpu.concatenate %29, %30, %2 in 1 : vector<2x16xbf16>, vector<2x64xbf16>, vector<2x32xbf16> -> vector<2x112xbf16>
    %c0_17 = arith.constant 0 : index
    %c0_18 = arith.constant 0 : index
    %32 = vector.load %arg11[%c0_17, %c0_18] : memref<112x128xbf16, #tpu.memory_space<vmem>>, vector<112x128xbf16>
    %cst_19 = arith.constant dense<0.000000e+00> : vector<2x128xf32>
    %33 = tpu.matmul %31, %32, %cst_19 {dimension_numbers = #tpu.dot_dimension_numbers<[1], [0], [0], [1], [0, 0, 1, 1], [], []>} : vector<2x112xbf16>, vector<112x128xbf16>, vector<2x128xf32> -> vector<2x128xf32>
    %c0_20 = arith.constant 0 : index
    %c0_21 = arith.constant 0 : index
    %34 = vector.load %arg12[%c0_20, %c0_21] : memref<1x128xf32, #tpu.memory_space<vmem>>, vector<1x128xf32>
    %35 = vector.broadcast %34 : vector<1x128xf32> to vector<2x128xf32>
    %36 = arith.addf %33, %35 : vector<2x128xf32>
    %37 = vector.extract_strided_slice %36 {offsets = [0, 0], sizes = [2, 32], strides = [1, 1]} : vector<2x128xf32> to vector<2x32xf32>
    %38 = arith.negf %37 : vector<2x32xf32>
    %39 = math.exp %38 : vector<2x32xf32>
    %cst_22 = arith.constant 1.000000e+00 : f32
    %40 = vector.broadcast %cst_22 : f32 to vector<2x32xf32>
    %41 = arith.addf %40, %39 : vector<2x32xf32>
    %42 = arith.divf %40, %41 : vector<2x32xf32>
    %43 = vector.extract_strided_slice %36 {offsets = [0, 32], sizes = [2, 32], strides = [1, 1]} : vector<2x128xf32> to vector<2x32xf32>
    %44 = arith.negf %43 : vector<2x32xf32>
    %45 = math.exp %44 : vector<2x32xf32>
    %cst_23 = arith.constant 1.000000e+00 : f32
    %46 = vector.broadcast %cst_23 : f32 to vector<2x32xf32>
    %47 = arith.addf %46, %45 : vector<2x32xf32>
    %48 = arith.divf %46, %47 : vector<2x32xf32>
    %49 = vector.extract_strided_slice %36 {offsets = [0, 64], sizes = [2, 32], strides = [1, 1]} : vector<2x128xf32> to vector<2x32xf32>
    %50 = math.tanh %49 : vector<2x32xf32>
    %51 = vector.extract_strided_slice %36 {offsets = [0, 96], sizes = [2, 32], strides = [1, 1]} : vector<2x128xf32> to vector<2x32xf32>
    %52 = arith.negf %51 : vector<2x32xf32>
    %53 = math.exp %52 : vector<2x32xf32>
    %cst_24 = arith.constant 1.000000e+00 : f32
    %54 = vector.broadcast %cst_24 : f32 to vector<2x32xf32>
    %55 = arith.addf %54, %53 : vector<2x32xf32>
    %56 = arith.divf %54, %55 : vector<2x32xf32>
    %57 = arith.mulf %48, %1 : vector<2x32xf32>
    %58 = arith.mulf %42, %50 : vector<2x32xf32>
    %59 = arith.addf %57, %58 : vector<2x32xf32>
    %60 = math.tanh %59 : vector<2x32xf32>
    %61 = arith.mulf %56, %60 : vector<2x32xf32>
    %c0_25 = arith.constant 0 : index
    %c0_26 = arith.constant 0 : index
    %62 = vector.load %arg18[%c0_25, %c0_26] : memref<2x32xf32, #tpu.memory_space<vmem>>, vector<2x32xf32>
    tpu.vector_store %arg18[%c0_25, %c0_26], %61 {strides = array<i32>} : memref<2x32xf32, #tpu.memory_space<vmem>>, vector<2x32xf32>,
    %c0_27 = arith.constant 0 : index
    %c0_28 = arith.constant 0 : index
    %63 = vector.load %arg19[%c0_27, %c0_28] : memref<2x32xf32, #tpu.memory_space<vmem>>, vector<2x32xf32>
    tpu.vector_store %arg19[%c0_27, %c0_28], %59 {strides = array<i32>} : memref<2x32xf32, #tpu.memory_space<vmem>>, vector<2x32xf32>,
    %64 = arith.truncf %61 : vector<2x32xf32> to vector<2x32xbf16>
    %c0_29 = arith.constant 0 : index
    %c0_30 = arith.constant 0 : index
    %c0_31 = arith.constant 0 : index
    %65 = vector.load %arg7[%c0_29, %c0_30, %c0_31] : memref<2x8x32xbf16, #tpu.memory_space<vmem>>, vector<2x8x32xbf16>
    %c0_32 = arith.constant 0 : index
    %c0_33 = arith.constant 0 : index
    %66 = vector.load %arg13[%c0_32, %c0_33] : memref<32x32xbf16, #tpu.memory_space<vmem>>, vector<32x32xbf16>
    %cst_34 = arith.constant dense<0.000000e+00> : vector<2x32xf32>
    %67 = tpu.matmul %64, %66, %cst_34 {dimension_numbers = #tpu.dot_dimension_numbers<[1], [0], [0], [1], [0, 0, 1, 1], [], []>} : vector<2x32xbf16>, vector<32x32xbf16>, vector<2x32xf32> -> vector<2x32xf32>
    %68 = vector.shape_cast %67 : vector<2x32xf32> to vector<2x1x32xf32>
    %69 = arith.extf %65 : vector<2x8x32xbf16> to vector<2x8x32xf32>
    %70 = vector.broadcast %68 : vector<2x1x32xf32> to vector<2x8x32xf32>
    %71 = arith.mulf %69, %70 : vector<2x8x32xf32>
    %cst_35 = arith.constant dense<0.000000e+00> : vector<2x8xf32>
    %72 = vector.multi_reduction <add>, %71, %cst_35 [2] : vector<2x8x32xf32> to vector<2x8xf32>
    %c0_36 = arith.constant 0 : index
    %c0_37 = arith.constant 0 : index
    %73 = vector.load %arg8[%c0_36, %c0_37] : memref<2x8xf32, #tpu.memory_space<vmem>>, vector<2x8xf32>
    %74 = arith.addf %72, %73 : vector<2x8xf32>
    %cst_38 = arith.constant dense<0xFF800000> : vector<2xf32>
    %75 = vector.multi_reduction <maximumf>, %74, %cst_38 [1] : vector<2x8xf32> to vector<2xf32>
    %76 = vector.shape_cast %75 : vector<2xf32> to vector<2x1xf32>
    %77 = vector.broadcast %76 : vector<2x1xf32> to vector<2x8xf32>
    %78 = arith.subf %74, %77 : vector<2x8xf32>
    %79 = math.exp %78 : vector<2x8xf32>
    %cst_39 = arith.constant dense<0.000000e+00> : vector<2xf32>
    %80 = vector.multi_reduction <add>, %79, %cst_39 [1] : vector<2x8xf32> to vector<2xf32>
    %81 = vector.shape_cast %80 : vector<2xf32> to vector<2x1xf32>
    %82 = vector.broadcast %81 : vector<2x1xf32> to vector<2x8xf32>
    %83 = arith.divf %79, %82 : vector<2x8xf32>
    %c0_40 = arith.constant 0 : index
    %c0_41 = arith.constant 0 : index
    %84 = vector.load %arg21[%c0_40, %c0_41] : memref<2x8xf32, #tpu.memory_space<vmem>>, vector<2x8xf32>
    tpu.vector_store %arg21[%c0_40, %c0_41], %83 {strides = array<i32>} : memref<2x8xf32, #tpu.memory_space<vmem>>, vector<2x8xf32>,
    %85 = vector.shape_cast %83 : vector<2x8xf32> to vector<2x8x1xf32>
    %86 = arith.extf %65 : vector<2x8x32xbf16> to vector<2x8x32xf32>
    %87 = vector.broadcast %85 : vector<2x8x1xf32> to vector<2x8x32xf32>
    %88 = arith.mulf %87, %86 : vector<2x8x32xf32>
    %cst_42 = arith.constant dense<0.000000e+00> : vector<2x32xf32>
    %89 = vector.multi_reduction <add>, %88, %cst_42 [1] : vector<2x8x32xf32> to vector<2x32xf32>
    %90 = arith.truncf %89 : vector<2x32xf32> to vector<2x32xbf16>
    %c0_43 = arith.constant 0 : index
    %c0_44 = arith.constant 0 : index
    %91 = vector.load %arg14[%c0_43, %c0_44] : memref<32x32xbf16, #tpu.memory_space<vmem>>, vector<32x32xbf16>
    %cst_45 = arith.constant dense<0.000000e+00> : vector<2x32xf32>
    %92 = tpu.matmul %90, %91, %cst_45 {dimension_numbers = #tpu.dot_dimension_numbers<[1], [0], [0], [1], [0, 0, 1, 1], [], []>} : vector<2x32xbf16>, vector<32x32xbf16>, vector<2x32xf32> -> vector<2x32xf32>
    %c0_46 = arith.constant 0 : index
    %c0_47 = arith.constant 0 : index
    %93 = vector.load %arg15[%c0_46, %c0_47] : memref<32x32xbf16, #tpu.memory_space<vmem>>, vector<32x32xbf16>
    %cst_48 = arith.constant dense<0.000000e+00> : vector<2x32xf32>
    %94 = tpu.matmul %64, %93, %cst_48 {dimension_numbers = #tpu.dot_dimension_numbers<[1], [0], [0], [1], [0, 0, 1, 1], [], []>} : vector<2x32xbf16>, vector<32x32xbf16>, vector<2x32xf32> -> vector<2x32xf32>
    %95 = arith.addf %92, %94 : vector<2x32xf32>
    %96 = math.tanh %95 : vector<2x32xf32>
    %c0_49 = arith.constant 0 : index
    %c0_50 = arith.constant 0 : index
    %97 = vector.load %arg20[%c0_49, %c0_50] : memref<2x32xf32, #tpu.memory_space<vmem>>, vector<2x32xf32>
    tpu.vector_store %arg20[%c0_49, %c0_50], %96 {strides = array<i32>} : memref<2x32xf32, #tpu.memory_space<vmem>>, vector<2x32xf32>,
    %98 = arith.truncf %96 : vector<2x32xf32> to vector<2x32xbf16>
    %c0_51 = arith.constant 0 : index
    %c0_52 = arith.constant 0 : index
    %99 = vector.load %arg16[%c0_51, %c0_52] : memref<32x64xbf16, #tpu.memory_space<vmem>>, vector<32x64xbf16>
    %cst_53 = arith.constant dense<0.000000e+00> : vector<2x64xf32>
    %100 = tpu.matmul %98, %99, %cst_53 {dimension_numbers = #tpu.dot_dimension_numbers<[1], [0], [0], [1], [0, 0, 1, 1], [], []>} : vector<2x32xbf16>, vector<32x64xbf16>, vector<2x64xf32> -> vector<2x64xf32>
    %c0_54 = arith.constant 0 : index
    %c0_55 = arith.constant 0 : index
    %c0_56 = arith.constant 0 : index
    %101 = vector.load %arg3[%c0_54, %c0_55, %c0_56] : memref<2x4x64xbf16, #tpu.memory_space<vmem>>, vector<2x4x64xbf16>
    %102 = vector.shape_cast %100 : vector<2x64xf32> to vector<2x1x64xf32>
    %103 = arith.extf %101 : vector<2x4x64xbf16> to vector<2x4x64xf32>
    %104 = vector.broadcast %102 : vector<2x1x64xf32> to vector<2x4x64xf32>
    %105 = arith.mulf %103, %104 : vector<2x4x64xf32>
    %cst_57 = arith.constant dense<0.000000e+00> : vector<2x4xf32>
    %106 = vector.multi_reduction <add>, %105, %cst_57 [2] : vector<2x4x64xf32> to vector<2x4xf32>
    %c0_58 = arith.constant 0 : index
    %c0_59 = arith.constant 0 : index
    %107 = vector.load %arg22[%c0_58, %c0_59] : memref<2x4xf32, #tpu.memory_space<vmem>>, vector<2x4xf32>
    tpu.vector_store %arg22[%c0_58, %c0_59], %106 {strides = array<i32>} : memref<2x4xf32, #tpu.memory_space<vmem>>, vector<2x4xf32>,
    %c0_60 = arith.constant 0 : index
    %c0_61 = arith.constant 0 : index
    %c0_62 = arith.constant 0 : index
    %108 = vector.load %arg4[%c0_60, %c0_61, %c0_62] : memref<2x24x32xbf16, #tpu.memory_space<vmem>>, vector<2x24x32xbf16>
    %c0_63 = arith.constant 0 : index
    %c0_64 = arith.constant 0 : index
    %c0_65 = arith.constant 0 : index
    %109 = vector.load %arg17[%c0_63, %c0_64, %c0_65] : memref<3x32x32xbf16, #tpu.memory_space<vmem>>, vector<1x32x32xbf16>
    %110 = vector.shape_cast %109 : vector<1x32x32xbf16> to vector<32x32xbf16>
    %cst_66 = arith.constant dense<0.000000e+00> : vector<2x32xf32>
    %111 = tpu.matmul %98, %110, %cst_66 {dimension_numbers = #tpu.dot_dimension_numbers<[1], [0], [0], [1], [0, 0, 1, 1], [], []>} : vector<2x32xbf16>, vector<32x32xbf16>, vector<2x32xf32> -> vector<2x32xf32>
    %112 = vector.shape_cast %111 : vector<2x32xf32> to vector<2x1x32xf32>
    %113 = arith.extf %108 : vector<2x24x32xbf16> to vector<2x24x32xf32>
    %114 = vector.broadcast %112 : vector<2x1x32xf32> to vector<2x24x32xf32>
    %115 = arith.mulf %113, %114 : vector<2x24x32xf32>
    %cst_67 = arith.constant dense<0.000000e+00> : vector<2x24xf32>
    %116 = vector.multi_reduction <add>, %115, %cst_67 [2] : vector<2x24x32xf32> to vector<2x24xf32>
    %c0_68 = arith.constant 0 : index
    %c0_69 = arith.constant 0 : index
    %c0_70 = arith.constant 0 : index
    %117 = vector.load %arg23[%c0_68, %c0_69, %c0_70] : memref<2x3x24xf32, #tpu.memory_space<vmem>>, vector<2x1x24xf32>
    %118 = vector.shape_cast %117 : vector<2x1x24xf32> to vector<2x24xf32>
    %119 = vector.shape_cast %116 : vector<2x24xf32> to vector<2x1x24xf32>
    tpu.vector_store %arg23[%c0_68, %c0_69, %c0_70], %119 {strides = array<i32>} : memref<2x3x24xf32, #tpu.memory_space<vmem>>, vector<2x1x24xf32>,
    %c1 = arith.constant 1 : index
    %c0_71 = arith.constant 0 : index
    %c0_72 = arith.constant 0 : index
    %120 = vector.load %arg17[%c1, %c0_71, %c0_72] : memref<3x32x32xbf16, #tpu.memory_space<vmem>>, vector<1x32x32xbf16>
    %121 = vector.shape_cast %120 : vector<1x32x32xbf16> to vector<32x32xbf16>
    %cst_73 = arith.constant dense<0.000000e+00> : vector<2x32xf32>
    %122 = tpu.matmul %98, %121, %cst_73 {dimension_numbers = #tpu.dot_dimension_numbers<[1], [0], [0], [1], [0, 0, 1, 1], [], []>} : vector<2x32xbf16>, vector<32x32xbf16>, vector<2x32xf32> -> vector<2x32xf32>
    %123 = vector.shape_cast %122 : vector<2x32xf32> to vector<2x1x32xf32>
    %124 = arith.extf %108 : vector<2x24x32xbf16> to vector<2x24x32xf32>
    %125 = vector.broadcast %123 : vector<2x1x32xf32> to vector<2x24x32xf32>
    %126 = arith.mulf %124, %125 : vector<2x24x32xf32>
    %cst_74 = arith.constant dense<0.000000e+00> : vector<2x24xf32>
    %127 = vector.multi_reduction <add>, %126, %cst_74 [2] : vector<2x24x32xf32> to vector<2x24xf32>
    %c0_75 = arith.constant 0 : index
    %c1_76 = arith.constant 1 : index
    %c0_77 = arith.constant 0 : index
    %128 = vector.load %arg23[%c0_75, %c1_76, %c0_77] : memref<2x3x24xf32, #tpu.memory_space<vmem>>, vector<2x1x24xf32>
    %129 = vector.shape_cast %128 : vector<2x1x24xf32> to vector<2x24xf32>
    %130 = vector.shape_cast %127 : vector<2x24xf32> to vector<2x1x24xf32>
    tpu.vector_store %arg23[%c0_75, %c1_76, %c0_77], %130 {strides = array<i32>} : memref<2x3x24xf32, #tpu.memory_space<vmem>>, vector<2x1x24xf32>,
    %c2 = arith.constant 2 : index
    %c0_78 = arith.constant 0 : index
    %c0_79 = arith.constant 0 : index
    %131 = vector.load %arg17[%c2, %c0_78, %c0_79] : memref<3x32x32xbf16, #tpu.memory_space<vmem>>, vector<1x32x32xbf16>
    %132 = vector.shape_cast %131 : vector<1x32x32xbf16> to vector<32x32xbf16>
    %cst_80 = arith.constant dense<0.000000e+00> : vector<2x32xf32>
    %133 = tpu.matmul %98, %132, %cst_80 {dimension_numbers = #tpu.dot_dimension_numbers<[1], [0], [0], [1], [0, 0, 1, 1], [], []>} : vector<2x32xbf16>, vector<32x32xbf16>, vector<2x32xf32> -> vector<2x32xf32>
    %134 = vector.shape_cast %133 : vector<2x32xf32> to vector<2x1x32xf32>
    %135 = arith.extf %108 : vector<2x24x32xbf16> to vector<2x24x32xf32>
    %136 = vector.broadcast %134 : vector<2x1x32xf32> to vector<2x24x32xf32>
    %137 = arith.mulf %135, %136 : vector<2x24x32xf32>
    %cst_81 = arith.constant dense<0.000000e+00> : vector<2x24xf32>
    %138 = vector.multi_reduction <add>, %137, %cst_81 [2] : vector<2x24x32xf32> to vector<2x24xf32>
    %c0_82 = arith.constant 0 : index
    %c2_83 = arith.constant 2 : index
    %c0_84 = arith.constant 0 : index
    %139 = vector.load %arg23[%c0_82, %c2_83, %c0_84] : memref<2x3x24xf32, #tpu.memory_space<vmem>>, vector<2x1x24xf32>
    %140 = vector.shape_cast %139 : vector<2x1x24xf32> to vector<2x24xf32>
    %141 = vector.shape_cast %138 : vector<2x24xf32> to vector<2x1x24xf32>
    tpu.vector_store %arg23[%c0_82, %c2_83, %c0_84], %141 {strides = array<i32>} : memref<2x3x24xf32, #tpu.memory_space<vmem>>, vector<2x1x24xf32>,
    return
  }
  func.func @transform_0(%arg0: i32) -> (i32, i32) {
    %c0_i32 = arith.constant 0 : i32
    %c0_i32_0 = arith.constant 0 : i32
    return %arg0, %c0_i32 : i32, i32
  }
  func.func @transform_1(%arg0: i32) -> (i32, i32, i32) {
    %c0_i32 = arith.constant 0 : i32
    %c0_i32_0 = arith.constant 0 : i32
    %c0_i32_1 = arith.constant 0 : i32
    return %arg0, %c0_i32, %c0_i32_0 : i32, i32, i32
  }
  func.func @transform_2(%arg0: i32) -> (i32, i32, i32) {
    %c0_i32 = arith.constant 0 : i32
    %c0_i32_0 = arith.constant 0 : i32
    %c0_i32_1 = arith.constant 0 : i32
    return %arg0, %c0_i32, %c0_i32_0 : i32, i32, i32
  }
  func.func @transform_3(%arg0: i32) -> (i32, i32, i32) {
    %c0_i32 = arith.constant 0 : i32
    %c0_i32_0 = arith.constant 0 : i32
    %c0_i32_1 = arith.constant 0 : i32
    return %arg0, %c0_i32, %c0_i32_0 : i32, i32, i32
  }
  func.func @transform_4(%arg0: i32) -> (i32, i32) {
    %c0_i32 = arith.constant 0 : i32
    %c0_i32_0 = arith.constant 0 : i32
    return %arg0, %c0_i32 : i32, i32
  }
  func.func @transform_5(%arg0: i32) -> (i32, i32) {
    %c0_i32 = arith.constant 0 : i32
    %c0_i32_0 = arith.constant 0 : i32
    return %arg0, %c0_i32 : i32, i32
  }
  func.func @transform_6(%arg0: i32) -> (i32, i32, i32) {
    %c0_i32 = arith.constant 0 : i32
    %c0_i32_0 = arith.constant 0 : i32
    %c0_i32_1 = arith.constant 0 : i32
    return %arg0, %c0_i32, %c0_i32_0 : i32, i32, i32
  }
  func.func @transform_7(%arg0: i32) -> (i32, i32) {
    %c0_i32 = arith.constant 0 : i32
    %c0_i32_0 = arith.constant 0 : i32
    return %arg0, %c0_i32 : i32, i32
  }
  func.func @transform_8(%arg0: i32) -> (i32, i32) {
    %c0_i32 = arith.constant 0 : i32
    %c0_i32_0 = arith.constant 0 : i32
    %c0_i32_1 = arith.constant 0 : i32
    return %c0_i32, %c0_i32_0 : i32, i32
  }
  func.func @transform_9(%arg0: i32) -> (i32, i32) {
    %c0_i32 = arith.constant 0 : i32
    %c0_i32_0 = arith.constant 0 : i32
    %c0_i32_1 = arith.constant 0 : i32
    return %c0_i32, %c0_i32_0 : i32, i32
  }
  func.func @transform_10(%arg0: i32) -> (i32, i32) {
    %c0_i32 = arith.constant 0 : i32
    %c0_i32_0 = arith.constant 0 : i32
    %c0_i32_1 = arith.constant 0 : i32
    return %c0_i32, %c0_i32_0 : i32, i32
  }
  func.func @transform_11(%arg0: i32) -> (i32, i32) {
    %c0_i32 = arith.constant 0 : i32
    %c0_i32_0 = arith.constant 0 : i32
    %c0_i32_1 = arith.constant 0 : i32
    return %c0_i32, %c0_i32_0 : i32, i32
  }
  func.func @transform_12(%arg0: i32) -> (i32, i32) {
    %c0_i32 = arith.constant 0 : i32
    %c0_i32_0 = arith.constant 0 : i32
    %c0_i32_1 = arith.constant 0 : i32
    return %c0_i32, %c0_i32_0 : i32, i32
  }
  func.func @transform_13(%arg0: i32) -> (i32, i32) {
    %c0_i32 = arith.constant 0 : i32
    %c0_i32_0 = arith.constant 0 : i32
    %c0_i32_1 = arith.constant 0 : i32
    return %c0_i32, %c0_i32_0 : i32, i32
  }
  func.func @transform_14(%arg0: i32) -> (i32, i32) {
    %c0_i32 = arith.constant 0 : i32
    %c0_i32_0 = arith.constant 0 : i32
    %c0_i32_1 = arith.constant 0 : i32
    return %c0_i32, %c0_i32_0 : i32, i32
  }
  func.func @transform_15(%arg0: i32) -> (i32, i32) {
    %c0_i32 = arith.constant 0 : i32
    %c0_i32_0 = arith.constant 0 : i32
    %c0_i32_1 = arith.constant 0 : i32
    return %c0_i32, %c0_i32_0 : i32, i32
  }
  func.func @transform_16(%arg0: i32) -> (i32, i32, i32) {
    %c0_i32 = arith.constant 0 : i32
    %c0_i32_0 = arith.constant 0 : i32
    %c0_i32_1 = arith.constant 0 : i32
    %c0_i32_2 = arith.constant 0 : i32
    return %c0_i32, %c0_i32_0, %c0_i32_1 : i32, i32, i32
  }
  func.func @transform_17(%arg0: i32) -> (i32, i32) {
    %c0_i32 = arith.constant 0 : i32
    %c0_i32_0 = arith.constant 0 : i32
    return %arg0, %c0_i32 : i32, i32
  }
  func.func @transform_18(%arg0: i32) -> (i32, i32) {
    %c0_i32 = arith.constant 0 : i32
    %c0_i32_0 = arith.constant 0 : i32
    return %arg0, %c0_i32 : i32, i32
  }
  func.func @transform_19(%arg0: i32) -> (i32, i32) {
    %c0_i32 = arith.constant 0 : i32
    %c0_i32_0 = arith.constant 0 : i32
    return %arg0, %c0_i32 : i32, i32
  }
  func.func @transform_20(%arg0: i32) -> (i32, i32) {
    %c0_i32 = arith.constant 0 : i32
    %c0_i32_0 = arith.constant 0 : i32
    return %arg0, %c0_i32 : i32, i32
  }
  func.func @transform_21(%arg0: i32) -> (i32, i32) {
    %c0_i32 = arith.constant 0 : i32
    %c0_i32_0 = arith.constant 0 : i32
    return %arg0, %c0_i32 : i32, i32
  }
  func.func @transform_22(%arg0: i32) -> (i32, i32, i32) {
    %c0_i32 = arith.constant 0 : i32
    %c0_i32_0 = arith.constant 0 : i32
    %c0_i32_1 = arith.constant 0 : i32
    return %arg0, %c0_i32, %c0_i32_0 : i32, i32, i32
  }
}

</mosaic_0001>

<llo_original>
// kernel: configuration_lxmert_decoder_forward.1
$region0: #{configuration_lxmert_decoder_forward.1}
  #allocation0 [shape = 'u32[]', space=smem, size = 0x4, offset = 0x4, fixed_abs, tag = 'smem constant byte address 0x4 - core index']
  #allocation1 [shape = 'u32[144,128]{1,0:T(1,128)}', space=vmem, size = 0x12000, scoped, tag = 'internal scratch']
  %s0 = inlined_call_operand.vmem [shape: bf16[2,8], index: 0, kind: input, shape index: {}]
  %s1 = inlined_call_operand.vmem [shape: bf16[2,36,64], index: 1, kind: input, shape index: {}]
  %s2 = inlined_call_operand.vmem [shape: bf16[2,4,64], index: 2, kind: input, shape index: {}]
  %s3 = inlined_call_operand.vmem [shape: bf16[2,24,32], index: 3, kind: input, shape index: {}]
  %s4 = inlined_call_operand.vmem [shape: f32[2,32], index: 4, kind: input, shape index: {}, may-alias: {4,17}]
  %s5 = inlined_call_operand.vmem [shape: f32[2,32], index: 5, kind: input, shape index: {}, may-alias: {5,18}]
  %s6 = inlined_call_operand.vmem [shape: bf16[2,8,32], index: 6, kind: input, shape index: {}]
  %s7 = inlined_call_operand.vmem [shape: f32[2,8], index: 7, kind: input, shape index: {}]
  %s8 = inlined_call_operand.vmem [shape: bf16[8,16], index: 8, kind: input, shape index: {}]
  %s9 = inlined_call_operand.vmem [shape: bf16[32,64], index: 9, kind: input, shape index: {}]
  %s10 = inlined_call_operand.vmem [shape: bf16[112,128], index: 10, kind: input, shape index: {}]
  %s11 = inlined_call_operand.vmem [shape: f32[1,128], index: 11, kind: input, shape index: {}]
  %s12 = inlined_call_operand.vmem [shape: bf16[32,32], index: 12, kind: input, shape index: {}]
  %s13 = inlined_call_operand.vmem [shape: bf16[32,32], index: 13, kind: input, shape index: {}]
  %s14 = inlined_call_operand.vmem [shape: bf16[32,32], index: 14, kind: input, shape index: {}]
  %s15 = inlined_call_operand.vmem [shape: bf16[32,64], index: 15, kind: input, shape index: {}]
  %s16 = inlined_call_operand.vmem [shape: bf16[3,32,32], index: 16, kind: input, shape index: {}]
  %s17 = inlined_call_operand.vmem [shape: f32[2,32], index: 17, kind: output, shape index: {0}, may-alias: {4,17}]
  %s18 = inlined_call_operand.vmem [shape: f32[2,32], index: 18, kind: output, shape index: {1}, may-alias: {5,18}]
  %s19 = inlined_call_operand.hbm [shape: f32[2,32], index: 19, kind: output, shape index: {2}]
  %s20 = inlined_call_operand.vmem [shape: f32[2,8], index: 20, kind: output, shape index: {3}]
  %s21 = inlined_call_operand.vmem [shape: f32[2,4], index: 21, kind: output, shape index: {4}]
  %s22 = inlined_call_operand.vmem [shape: f32[2,3,24], index: 22, kind: output, shape index: {5}]
  %23 = xla_tuple %s17, %s18, %s19, %s20, %s21, %s22
  %s24 = sld [smem:[#allocation0]]
  $region118: #{configuration_lxmert_decoder_forward.1} parent=0
    _
  %s26 = ssub.s32 1, %s24
  %s27 = scalar_select 0, %s26, %s24
  $region1: #{configuration_lxmert_decoder_forward.1} parent=0
    #allocation2 [shape = 'u8[1024]{0}', space=vmem, size = 0x400, scoped, tag = 'output window, operand 2, single buffered']
    #allocation3 [shape = 's32[1]{0}', space=sflag, size = 0x4, scoped, tag = 'scoped memory for configuration_lxmert_decoder_forward.1']
    %28 = vsyncpa [#allocation3], 0
    // Predicated region
    $region2: #{configuration_lxmert_decoder_forward.1} parent=1 // pred_check
      _
    $region3: #{configuration_lxmert_decoder_forward.1} parent=1 // pred_check_branch
      %30 = sbr.rel (0) target = $region5
    $region4: #{configuration_lxmert_decoder_forward.1} parent=1 // pred_region
      _
    $region5: #{configuration_lxmert_decoder_forward.1} parent=1 // pred_fallthru
      _
    // Predicated region
    $region6: #{configuration_lxmert_decoder_forward.1} parent=1 // pred_check
      _
    $region7: #{configuration_lxmert_decoder_forward.1} parent=1 // pred_check_branch
      %32 = sbr.rel (0) target = $region9
    $region8: #{configuration_lxmert_decoder_forward.1} parent=1 // pred_region
      _
    $region9: #{configuration_lxmert_decoder_forward.1} parent=1 // pred_fallthru
      _
    // Predicated region
    $region10: #{configuration_lxmert_decoder_forward.1} parent=1 // pred_check
      _
    $region11: #{configuration_lxmert_decoder_forward.1} parent=1 // pred_check_branch
      %34 = sbr.rel (0) target = $region13
    $region12: #{configuration_lxmert_decoder_forward.1} parent=1 // pred_region
      _
    $region13: #{configuration_lxmert_decoder_forward.1} parent=1 // pred_fallthru
      _
    // Predicated region
    $region14: #{configuration_lxmert_decoder_forward.1} parent=1 // pred_check
      _
    $region15: #{configuration_lxmert_decoder_forward.1} parent=1 // pred_check_branch
      %36 = sbr.rel (0) target = $region17
    $region16: #{configuration_lxmert_decoder_forward.1} parent=1 // pred_region
      _
    $region17: #{configuration_lxmert_decoder_forward.1} parent=1 // pred_fallthru
      _
    // Predicated region
    $region18: #{configuration_lxmert_decoder_forward.1} parent=1 // pred_check
      _
    $region19: #{configuration_lxmert_decoder_forward.1} parent=1 // pred_check_branch
      %38 = sbr.rel (0) target = $region21
    $region20: #{configuration_lxmert_decoder_forward.1} parent=1 // pred_region
      _
    $region21: #{configuration_lxmert_decoder_forward.1} parent=1 // pred_fallthru
      _
    // Predicated region
    $region22: #{configuration_lxmert_decoder_forward.1} parent=1 // pred_check
      _
    $region23: #{configuration_lxmert_decoder_forward.1} parent=1 // pred_check_branch
      %40 = sbr.rel (0) target = $region25
    $region24: #{configuration_lxmert_decoder_forward.1} parent=1 // pred_region
      _
    $region25: #{configuration_lxmert_decoder_forward.1} parent=1 // pred_fallthru
      _
    // Predicated region
    $region26: #{configuration_lxmert_decoder_forward.1} parent=1 // pred_check
      _
    $region27: #{configuration_lxmert_decoder_forward.1} parent=1 // pred_check_branch
      %42 = sbr.rel (0) target = $region29
    $region28: #{configuration_lxmert_decoder_forward.1} parent=1 // pred_region
      _
    $region29: #{configuration_lxmert_decoder_forward.1} parent=1 // pred_fallthru
      _
    // Predicated region
    $region30: #{configuration_lxmert_decoder_forward.1} parent=1 // pred_check
      _
    $region31: #{configuration_lxmert_decoder_forward.1} parent=1 // pred_check_branch
      %44 = sbr.rel (0) target = $region33
    $region32: #{configuration_lxmert_decoder_forward.1} parent=1 // pred_region
      _
    $region33: #{configuration_lxmert_decoder_forward.1} parent=1 // pred_fallthru
      _
    // Predicated region
    $region34: #{configuration_lxmert_decoder_forward.1} parent=1 // pred_check
      _
    $region35: #{configuration_lxmert_decoder_forward.1} parent=1 // pred_check_branch
      %46 = sbr.rel (0) target = $region37
    $region36: #{configuration_lxmert_decoder_forward.1} parent=1 // pred_region
      _
    $region37: #{configuration_lxmert_decoder_forward.1} parent=1 // pred_fallthru
      _
    // Predicated region
    $region38: #{configuration_lxmert_decoder_forward.1} parent=1 // pred_check
      _
    $region39: #{configuration_lxmert_decoder_forward.1} parent=1 // pred_check_branch
      %48 = sbr.rel (0) target = $region41
    $region40: #{configuration_lxmert_decoder_forward.1} parent=1 // pred_region
      _
    $region41: #{configuration_lxmert_decoder_forward.1} parent=1 // pred_fallthru
      _
    // Predicated region
    $region42: #{configuration_lxmert_decoder_forward.1} parent=1 // pred_check
      _
    $region43: #{configuration_lxmert_decoder_forward.1} parent=1 // pred_check_branch
      %50 = sbr.rel (0) target = $region45
    $region44: #{configuration_lxmert_decoder_forward.1} parent=1 // pred_region
      _
    $region45: #{configuration_lxmert_decoder_forward.1} parent=1 // pred_fallthru
      _
    // Predicated region
    $region46: #{configuration_lxmert_decoder_forward.1} parent=1 // pred_check
      _
    $region47: #{configuration_lxmert_decoder_forward.1} parent=1 // pred_check_branch
      %52 = sbr.rel (0) target = $region49
    $region48: #{configuration_lxmert_decoder_forward.1} parent=1 // pred_region
      _
    $region49: #{configuration_lxmert_decoder_forward.1} parent=1 // pred_fallthru
      _
    // Predicated region
    $region50: #{configuration_lxmert_decoder_forward.1} parent=1 // pred_check
      _
    $region51: #{configuration_lxmert_decoder_forward.1} parent=1 // pred_check_branch
      %54 = sbr.rel (0) target = $region53
    $region52: #{configuration_lxmert_decoder_forward.1} parent=1 // pred_region
      _
    $region53: #{configuration_lxmert_decoder_forward.1} parent=1 // pred_fallthru
      _
    // Predicated region
    $region54: #{configuration_lxmert_decoder_forward.1} parent=1 // pred_check
      _
    $region55: #{configuration_lxmert_decoder_forward.1} parent=1 // pred_check_branch
      %56 = sbr.rel (0) target = $region57
    $region56: #{configuration_lxmert_decoder_forward.1} parent=1 // pred_region
      _
    $region57: #{configuration_lxmert_decoder_forward.1} parent=1 // pred_fallthru
      _
    // Predicated region
    $region58: #{configuration_lxmert_decoder_forward.1} parent=1 // pred_check
      _
    $region59: #{configuration_lxmert_decoder_forward.1} parent=1 // pred_check_branch
      %58 = sbr.rel (0) target = $region61
    $region60: #{configuration_lxmert_decoder_forward.1} parent=1 // pred_region
      _
    $region61: #{configuration_lxmert_decoder_forward.1} parent=1 // pred_fallthru
      _
    // Predicated region
    $region62: #{configuration_lxmert_decoder_forward.1} parent=1 // pred_check
      _
    $region63: #{configuration_lxmert_decoder_forward.1} parent=1 // pred_check_branch
      %60 = sbr.rel (0) target = $region65
    $region64: #{configuration_lxmert_decoder_forward.1} parent=1 // pred_region
      _
    $region65: #{configuration_lxmert_decoder_forward.1} parent=1 // pred_fallthru
      _
    // Predicated region
    $region66: #{configuration_lxmert_decoder_forward.1} parent=1 // pred_check
      _
    $region67: #{configuration_lxmert_decoder_forward.1} parent=1 // pred_check_branch
      %62 = sbr.rel (0) target = $region69
    $region68: #{configuration_lxmert_decoder_forward.1} parent=1 // pred_region
      _
    $region69: #{configuration_lxmert_decoder_forward.1} parent=1 // pred_fallthru
      _
    %v64 = vld [vmem:[%s4] sm:$0x3]
    %v65 = vld [vmem:[%s5] sm:$0x3]
    %v66 = vpack.c.bf16 %v64, %v64
    %v67 = vld [vmem:[%s0] sm:$0x1]
    %v68 = vld [vmem:[%s8] sm:$0xf]
    %vm69 = vcmask 64512
    %v71 = vsel %vm69, %v67, 0
    %vm73 = vcmask 1043456
    %v75 = vsel %vm73, %v68, 0
    %77 = vmatprep.subr.bf16.mxu0 0
    %78 = vmatpush1.bf16.msra.mxu0 0
    %79 = vmatprep.subr.bf16.mxu0 0
    %80 = vmatpush1.bf16.msra.mxu0 0
    %81 = vmatprep.subr.bf16.mxu0 0
    %82 = vmatpush1.bf16.msra.mxu0 0
    %83 = vmatprep.subr.bf16.mxu0 0
    %84 = vmatpush1.bf16.msra.mxu0 0
    %85 = vmatprep.subr.bf16.mxu0 0
    %86 = vmatpush1.bf16.msra.mxu0 0
    %87 = vmatprep.subr.bf16.mxu0 0
    %88 = vmatpush1.bf16.msra.mxu0 0
    %89 = vmatprep.subr.bf16.mxu0 0
    %90 = vmatpush1.bf16.msra.mxu0 0
    %91 = vmatprep.subr.bf16.mxu0 0
    %92 = vmatpush1.bf16.msra.mxu0 %v75
    %93 = vmatprep.subr.bf16.mxu0 0
    %94 = vmatpush2.bf16.msra.mxu0 0
    %95 = vmatprep.subr.bf16.mxu0 0
    %96 = vmatpush2.bf16.msra.mxu0 0
    %97 = vmatprep.subr.bf16.mxu0 0
    %98 = vmatpush2.bf16.msra.mxu0 0
    %99 = vmatprep.subr.bf16.mxu0 0
    %100 = vmatpush2.bf16.msra.mxu0 0
    %101 = vmatprep.subr.bf16.mxu0 0
    %102 = vmatpush2.bf16.msra.mxu0 0
    %103 = vmatprep.subr.bf16.mxu0 0
    %104 = vmatpush2.bf16.msra.mxu0 0
    %105 = vmatprep.subr.bf16.mxu0 0
    %106 = vmatpush2.bf16.msra.mxu0 0
    %107 = vmatprep.subr.bf16.mxu0 0
    %108 = vmatpush2.bf16.msra.mxu0 0
    %109 = vmatprep.mubr.bf16.mxu0 0
    %110 = vmatmul.mubr.bf16.gmra.mxu0 %v71
    %v111 = vpop.f32.mrf.mxu0
    %v112 = vadd.f32 0.0, %v111
    %v113 = vpop.f32.mrf.mxu0
    %v114 = vpop.f32.mrf.mxu0
    %v115 = vpop.f32.mrf.mxu0
    %116 = vdwg.mxu0
    %v117 = vtanh.pop %v112
    %v118 = vld [vmem:[%s1] sm:$0xf]
    %v119 = vld [vmem:[%s1 + $0x4] sm:$0xf]
    %v120 = vld [vmem:[%s1 + $0x8] sm:$0xf]
    %v121 = vld [vmem:[%s1 + $0xc] sm:$0xf]
    %v122 = vld [vmem:[%s1 + $0x10] sm:$0x3]
    %v123 = vld [vmem:[%s1 + $0x14] sm:$0xf]
    %v124 = vld [vmem:[%s1 + $0x18] sm:$0xf]
    %v125 = vld [vmem:[%s1 + $0x1c] sm:$0xf]
    %v126 = vld [vmem:[%s1 + $0x20] sm:$0xf]
    %v127 = vld [vmem:[%s1 + $0x24] sm:$0x3]
    %v128 = vld [vmem:[%s9] sm:$0xf]
    %v129 = vld [vmem:[%s9 + $0x4] sm:$0xf]
    %v130 = vld [vmem:[%s9 + $0x8] sm:$0xf]
    %v131 = vld [vmem:[%s9 + $0xc] sm:$0xf]
    %v136 = vunpack.c.l.b16 %v128
    %v137 = vunpack.c.l.b16 %v129
    %v138 = vunpack.c.l.b16 %v130
    %v139 = vunpack.c.l.b16 %v131
    %v140 = vpack.c.b16 %v137, %v136
    %v141 = vpack.c.b16 %v139, %v138
    %vm144 = vcmask 261120
    %v146 = vsel %vm144, %v66, 0
    %148 = vmatprep.subr.bf16.mxu0 0
    %149 = vmatpush1.bf16.msra.mxu0 0
    %150 = vmatprep.subr.bf16.mxu0 0
    %151 = vmatpush1.bf16.msra.mxu0 0
    %152 = vmatprep.subr.bf16.mxu0 0
    %153 = vmatpush1.bf16.msra.mxu0 0
    %154 = vmatprep.subr.bf16.mxu0 0
    %155 = vmatpush1.bf16.msra.mxu0 0
    %156 = vmatprep.subr.bf16.mxu0 0
    %157 = vmatpush1.bf16.msra.mxu0 0
    %158 = vmatprep.subr.bf16.mxu0 0
    %159 = vmatpush1.bf16.msra.mxu0 0
    %160 = vmatprep.subr.bf16.mxu0 0
    %161 = vmatpush1.bf16.msra.mxu0 %v141
    %162 = vmatprep.subr.bf16.mxu0 0
    %163 = vmatpush1.bf16.msra.mxu0 %v140
    %164 = vmatprep.subr.bf16.mxu0 0
    %165 = vmatpush2.bf16.msra.mxu0 0
    %166 = vmatprep.subr.bf16.mxu0 0
    %167 = vmatpush2.bf16.msra.mxu0 0
    %168 = vmatprep.subr.bf16.mxu0 0
    %169 = vmatpush2.bf16.msra.mxu0 0
    %170 = vmatprep.subr.bf16.mxu0 0
    %171 = vmatpush2.bf16.msra.mxu0 0
    %172 = vmatprep.subr.bf16.mxu0 0
    %173 = vmatpush2.bf16.msra.mxu0 0
    %174 = vmatprep.subr.bf16.mxu0 0
    %175 = vmatpush2.bf16.msra.mxu0 0
    %176 = vmatprep.subr.bf16.mxu0 0
    %177 = vmatpush2.bf16.msra.mxu0 0
    %178 = vmatprep.subr.bf16.mxu0 0
    %179 = vmatpush2.bf16.msra.mxu0 0
    %180 = vmatprep.mubr.bf16.mxu0 0
    %181 = vmatmul.mubr.bf16.gmra.mxu0 %v146
    %v182 = vpop.f32.mrf.mxu0
    %v183 = vadd.f32 0.0, %v182
    %v184 = vpop.f32.mrf.mxu0
    %v185 = vpop.f32.mrf.mxu0
    %v186 = vpop.f32.mrf.mxu0
    %187 = vdwg.mxu0
    %v190 = vunpack.c.l.s4 1966171168
    %v191 = vunpack.c.0.s8 %v190
    %v192 = vlaneseq
    %v193 = vshrl.u32 %v192, 7
    %v194 = vsub.s32 %v191, %v193
    %v195 = vrot.slane %v183, %v194
    %v196 = vcombine.high %v195, %v195
    %v198 = vunpack.c.l.s4 1966171168
    %v199 = vunpack.c.0.s8 %v198
    %v200 = vlaneseq
    %v201 = vshrl.u32 %v200, 7
    %v202 = vsub.s32 %v199, %v201
    %v203 = vrot.slane %v195, %v202
    %v205 = vunpack.c.l.s4 1966171168
    %v206 = vunpack.c.0.s8 %v205
    %v207 = vlaneseq
    %v208 = vshrl.u32 %v207, 7
    %v209 = vsub.s32 %v206, %v208
    %v210 = vrot.slane %v196, %v209
    %v211 = vunpack.c.l.bf16 %v118
    %v212 = vunpack.c.l.bf16 %v119
    %v213 = vunpack.c.l.bf16 %v120
    %v214 = vunpack.c.l.bf16 %v121
    %v215 = vunpack.c.l.bf16 %v122
    %v216 = vunpack.c.l.bf16 %v123
    %v217 = vunpack.c.l.bf16 %v124
    %v218 = vunpack.c.l.bf16 %v125
    %v219 = vunpack.c.l.bf16 %v126
    %v220 = vunpack.c.l.bf16 %v127
    %v221 = vlaneseq
    %v222 = vshrl.u32 %v221, 7
    %v223 = vsub.s32 0, %v222
    %v224 = vrot.slane %v203, %v223
    %v225 = vlaneseq
    %v226 = vshrl.u32 %v225, 7
    %v227 = vsub.s32 0, %v226
    %v228 = vrot.slane %v210, %v227
    %v231 = vmul.f32 %v211, %v224
    %v232 = vmul.f32 %v212, %v224
    %v233 = vmul.f32 %v213, %v224
    %v234 = vmul.f32 %v214, %v224
    %v235 = vmul.f32 %v215, %v224
    %v236 = vmul.f32 %v216, %v228
    %v237 = vmul.f32 %v217, %v228
    %v238 = vmul.f32 %v218, %v228
    %v239 = vmul.f32 %v219, %v228
    %v240 = vmul.f32 %v220, %v228
    %vm241 = vcmask 523264
    %v242 = vsel %vm241, %v231, 0.0
    %243 = vadd.xlane.f32.xlu0 %v242
    %v244 = vpop.xlane.xlu0 %243
    %v245 = vsel %vm241, %v232, 0.0
    %246 = vadd.xlane.f32.xlu0 %v245
    %v247 = vpop.xlane.xlu0 %246
    %v248 = vsel %vm241, %v233, 0.0
    %249 = vadd.xlane.f32.xlu0 %v248
    %v250 = vpop.xlane.xlu0 %249
    %v251 = vsel %vm241, %v234, 0.0
    %252 = vadd.xlane.f32.xlu0 %v251
    %v253 = vpop.xlane.xlu0 %252
    %vm254 = vcmask 519168
    %v255 = vsel %vm254, %v235, 0.0
    %256 = vadd.xlane.f32.xlu0 %v255
    %v257 = vpop.xlane.xlu0 %256
    %v258 = vsel %vm241, %v236, 0.0
    %259 = vadd.xlane.f32.xlu0 %v258
    %v260 = vpop.xlane.xlu0 %259
    %v261 = vsel %vm241, %v237, 0.0
    %262 = vadd.xlane.f32.xlu0 %v261
    %v263 = vpop.xlane.xlu0 %262
    %v264 = vsel %vm241, %v238, 0.0
    %265 = vadd.xlane.f32.xlu0 %v264
    %v266 = vpop.xlane.xlu0 %265
    %v267 = vsel %vm241, %v239, 0.0
    %268 = vadd.xlane.f32.xlu0 %v267
    %v269 = vpop.xlane.xlu0 %268
    %v270 = vsel %vm254, %v240, 0.0
    %271 = vadd.xlane.f32.xlu0 %v270
    %v272 = vpop.xlane.xlu0 %271
    %v283 = vlaneseq
    %v284 = vand.u32 %v283, 127
    %v285 = vlaneseq
    %v286 = vshrl.u32 %v285, 7
    %v287 = vsub.s32 %v284, %v286
    %v288 = vrot.slane %v244, %v287
    %v289 = vadd.s32 %v284, 4294967288
    %v290 = vlaneseq
    %v291 = vshrl.u32 %v290, 7
    %v292 = vsub.s32 %v289, %v291
    %v293 = vrot.slane %v247, %v292
    %vm294 = vcmask 130112
    %v295 = vsel %vm294, %v293, %v288
    %v296 = vadd.s32 %v284, 4294967280
    %v297 = vlaneseq
    %v298 = vshrl.u32 %v297, 7
    %v299 = vsub.s32 %v296, %v298
    %v300 = vrot.slane %v250, %v299
    %vm301 = vcmask 195712
    %v302 = vsel %vm301, %v300, %v295
    %v303 = vadd.s32 %v284, 4294967272
    %v304 = vlaneseq
    %v305 = vshrl.u32 %v304, 7
    %v306 = vsub.s32 %v303, %v305
    %v307 = vrot.slane %v253, %v306
    %vm308 = vcmask 261312
    %v309 = vsel %vm308, %v307, %v302
    %v310 = vadd.s32 %v284, 4294967264
    %v311 = vlaneseq
    %v312 = vshrl.u32 %v311, 7
    %v313 = vsub.s32 %v310, %v312
    %v314 = vrot.slane %v257, %v313
    %vm315 = vcmask 326912
    %v316 = vsel %vm315, %v314, %v309
    %v317 = vlaneseq
    %v318 = vshrl.u32 %v317, 7
    %v319 = vsub.s32 %v284, %v318
    %v320 = vrot.slane %v260, %v319
    %v321 = vlaneseq
    %v322 = vshrl.u32 %v321, 7
    %v323 = vsub.s32 %v289, %v322
    %v324 = vrot.slane %v263, %v323
    %v325 = vsel %vm294, %v324, %v320
    %v326 = vlaneseq
    %v327 = vshrl.u32 %v326, 7
    %v328 = vsub.s32 %v296, %v327
    %v329 = vrot.slane %v266, %v328
    %v330 = vsel %vm301, %v329, %v325
    %v331 = vlaneseq
    %v332 = vshrl.u32 %v331, 7
    %v333 = vsub.s32 %v303, %v332
    %v334 = vrot.slane %v269, %v333
    %v335 = vsel %vm308, %v334, %v330
    %v336 = vlaneseq
    %v337 = vshrl.u32 %v336, 7
    %v338 = vsub.s32 %v310, %v337
    %v339 = vrot.slane %v272, %v338
    %v340 = vsel %vm315, %v339, %v335
    %vm341 = vcmask 1041409
    %v342 = vsel %vm341, %v340, %v316
    %vm344 = vcmask 287744
    %v345 = vsel %vm344, %v342, -inf
    %346 = vmax.xlane.f32.xlu0 %v345
    %v347 = vpop.xlane.xlu0 %346
    %v349 = vlaneseq
    %v350 = vshrl.u32 %v349, 7
    %v351 = vsub.s32 0, %v350
    %v352 = vrot.slane %v347, %v351
    %v353 = vlaneseq
    %v354 = vshrl.u32 %v353, 7
    %v355 = vsub.s32 1, %v354
    %v356 = vrot.slane %v347, %v355
    %v359 = vsub.f32 %v244, %v352
    %v360 = vsub.f32 %v247, %v352
    %v361 = vsub.f32 %v250, %v352
    %v362 = vsub.f32 %v253, %v352
    %v363 = vsub.f32 %v257, %v352
    %v364 = vsub.f32 %v260, %v356
    %v365 = vsub.f32 %v263, %v356
    %v366 = vsub.f32 %v266, %v356
    %v367 = vsub.f32 %v269, %v356
    %v368 = vsub.f32 %v272, %v356
    %v369 = vmul.f32 %v359, 1.442695
    %v370 = vpow.pop %v369
    %v371 = vmul.f32 %v360, 1.442695
    %v372 = vpow.pop %v371
    %v373 = vmul.f32 %v361, 1.442695
    %v374 = vpow.pop %v373
    %v375 = vmul.f32 %v362, 1.442695
    %v376 = vpow.pop %v375
    %v377 = vmul.f32 %v363, 1.442695
    %v378 = vpow.pop %v377
    %v379 = vmul.f32 %v364, 1.442695
    %v380 = vpow.pop %v379
    %v381 = vmul.f32 %v365, 1.442695
    %v382 = vpow.pop %v381
    %v383 = vmul.f32 %v366, 1.442695
    %v384 = vpow.pop %v383
    %v385 = vmul.f32 %v367, 1.442695
    %v386 = vpow.pop %v385
    %v387 = vmul.f32 %v368, 1.442695
    %v388 = vpow.pop %v387
    %399 = vset.pattern.permute.xlu0 0
    %400 = vperm.xlu0 %399, %v370
    %v401 = vpop.permute.xlu0 %400
    %402 = vset.pattern.permute.xlu0 0
    %403 = vperm.xlu0 %402, %v372
    %v404 = vpop.permute.xlu0 %403
    %405 = vset.pattern.permute.xlu0 0
    %406 = vperm.xlu0 %405, %v374
    %v407 = vpop.permute.xlu0 %406
    %408 = vset.pattern.permute.xlu0 0
    %409 = vperm.xlu0 %408, %v376
    %v410 = vpop.permute.xlu0 %409
    %411 = vset.pattern.permute.xlu0 0
    %412 = vperm.xlu0 %411, %v378
    %v413 = vpop.permute.xlu0 %412
    %414 = vset.pattern.permute.xlu0 0
    %415 = vperm.xlu0 %414, %v380
    %v416 = vpop.permute.xlu0 %415
    %417 = vset.pattern.permute.xlu0 0
    %418 = vperm.xlu0 %417, %v382
    %v419 = vpop.permute.xlu0 %418
    %420 = vset.pattern.permute.xlu0 0
    %421 = vperm.xlu0 %420, %v384
    %v422 = vpop.permute.xlu0 %421
    %423 = vset.pattern.permute.xlu0 0
    %424 = vperm.xlu0 %423, %v386
    %v425 = vpop.permute.xlu0 %424
    %426 = vset.pattern.permute.xlu0 0
    %427 = vperm.xlu0 %426, %v388
    %v428 = vpop.permute.xlu0 %427
    %v429 = vlaneseq
    %v430 = vshrl.u32 %v429, 7
    %v431 = vsub.s32 %v284, %v430
    %v432 = vrot.slane %v401, %v431
    %v433 = vlaneseq
    %v434 = vshrl.u32 %v433, 7
    %v435 = vsub.s32 %v289, %v434
    %v436 = vrot.slane %v404, %v435
    %v437 = vsel %vm294, %v436, %v432
    %v438 = vlaneseq
    %v439 = vshrl.u32 %v438, 7
    %v440 = vsub.s32 %v296, %v439
    %v441 = vrot.slane %v407, %v440
    %v442 = vsel %vm301, %v441, %v437
    %v443 = vlaneseq
    %v444 = vshrl.u32 %v443, 7
    %v445 = vsub.s32 %v303, %v444
    %v446 = vrot.slane %v410, %v445
    %v447 = vsel %vm308, %v446, %v442
    %v448 = vlaneseq
    %v449 = vshrl.u32 %v448, 7
    %v450 = vsub.s32 %v310, %v449
    %v451 = vrot.slane %v413, %v450
    %v452 = vsel %vm315, %v451, %v447
    %v453 = vlaneseq
    %v454 = vshrl.u32 %v453, 7
    %v455 = vsub.s32 %v284, %v454
    %v456 = vrot.slane %v416, %v455
    %v457 = vlaneseq
    %v458 = vshrl.u32 %v457, 7
    %v459 = vsub.s32 %v289, %v458
    %v460 = vrot.slane %v419, %v459
    %v461 = vsel %vm294, %v460, %v456
    %v462 = vlaneseq
    %v463 = vshrl.u32 %v462, 7
    %v464 = vsub.s32 %v296, %v463
    %v465 = vrot.slane %v422, %v464
    %v466 = vsel %vm301, %v465, %v461
    %v467 = vlaneseq
    %v468 = vshrl.u32 %v467, 7
    %v469 = vsub.s32 %v303, %v468
    %v470 = vrot.slane %v425, %v469
    %v471 = vsel %vm308, %v470, %v466
    %v472 = vlaneseq
    %v473 = vshrl.u32 %v472, 7
    %v474 = vsub.s32 %v310, %v473
    %v475 = vrot.slane %v428, %v474
    %v476 = vsel %vm315, %v475, %v471
    %v477 = vsel %vm341, %v476, %v452
    %v479 = vsel %vm344, %v477, 0.0
    %480 = vadd.xlane.f32.xlu0 %v479
    %v481 = vpop.xlane.xlu0 %480
    %v483 = vlaneseq
    %v484 = vshrl.u32 %v483, 7
    %v485 = vsub.s32 0, %v484
    %v486 = vrot.slane %v481, %v485
    %v487 = vlaneseq
    %v488 = vshrl.u32 %v487, 7
    %v489 = vsub.s32 1, %v488
    %v490 = vrot.slane %v481, %v489
    %v493 = vrcp.pop %v486
    %v494 = vmul.f32 %v370, %v493
    %v495 = vmul.f32 %v372, %v493
    %v496 = vmul.f32 %v374, %v493
    %v497 = vmul.f32 %v376, %v493
    %v498 = vmul.f32 %v378, %v493
    %v499 = vrcp.pop %v490
    %v500 = vmul.f32 %v380, %v499
    %v501 = vmul.f32 %v382, %v499
    %v502 = vmul.f32 %v384, %v499
    %v503 = vmul.f32 %v386, %v499
    %v504 = vmul.f32 %v388, %v499
    %506 = vset.pattern.permute.xlu0 0
    %507 = vperm.xlu0 %506, %v494
    %v508 = vpop.permute.xlu0 %507
    %511 = vset.pattern.permute.xlu0 0
    %512 = vperm.xlu0 %511, %v495
    %v513 = vpop.permute.xlu0 %512
    %516 = vset.pattern.permute.xlu0 0
    %517 = vperm.xlu0 %516, %v496
    %v518 = vpop.permute.xlu0 %517
    %521 = vset.pattern.permute.xlu0 0
    %522 = vperm.xlu0 %521, %v497
    %v523 = vpop.permute.xlu0 %522
    %526 = vset.pattern.permute.xlu0 0
    %527 = vperm.xlu0 %526, %v498
    %v528 = vpop.permute.xlu0 %527
    %531 = vset.pattern.permute.xlu0 0
    %532 = vperm.xlu0 %531, %v500
    %v533 = vpop.permute.xlu0 %532
    %536 = vset.pattern.permute.xlu0 0
    %537 = vperm.xlu0 %536, %v501
    %v538 = vpop.permute.xlu0 %537
    %541 = vset.pattern.permute.xlu0 0
    %542 = vperm.xlu0 %541, %v502
    %v543 = vpop.permute.xlu0 %542
    %546 = vset.pattern.permute.xlu0 0
    %547 = vperm.xlu0 %546, %v503
    %v548 = vpop.permute.xlu0 %547
    %551 = vset.pattern.permute.xlu0 0
    %552 = vperm.xlu0 %551, %v504
    %v553 = vpop.permute.xlu0 %552
    %v555 = vmul.f32 %v508, %v211
    %v556 = vmul.f32 %v513, %v212
    %v557 = vmul.f32 %v518, %v213
    %v558 = vmul.f32 %v523, %v214
    %v559 = vmul.f32 %v528, %v215
    %v560 = vmul.f32 %v533, %v216
    %v561 = vmul.f32 %v538, %v217
    %v562 = vmul.f32 %v543, %v218
    %v563 = vmul.f32 %v548, %v219
    %v564 = vmul.f32 %v553, %v220
    %v565 = vsel %vm241, %v555, 0.0
    %v566 = vsel %vm241, %v556, 0.0
    %v567 = vadd.f32 %v565, %v566
    %v568 = vsel %vm241, %v557, 0.0
    %v569 = vadd.f32 %v567, %v568
    %v570 = vsel %vm241, %v558, 0.0
    %v571 = vadd.f32 %v569, %v570
    %v572 = vsel %vm254, %v559, 0.0
    %v573 = vadd.f32 %v571, %v572
    %v574 = vrot.slane %v573, 4
    %v575 = vadd.f32 %v573, %v574
    %v576 = vrot.slane %v575, 2
    %v577 = vadd.f32 %v575, %v576
    %v578 = vrot.slane %v577, 1
    %v579 = vadd.f32 %v577, %v578
    %v580 = vsel %vm241, %v560, 0.0
    %v581 = vsel %vm241, %v561, 0.0
    %v582 = vadd.f32 %v580, %v581
    %v583 = vsel %vm241, %v562, 0.0
    %v584 = vadd.f32 %v582, %v583
    %v585 = vsel %vm241, %v563, 0.0
    %v586 = vadd.f32 %v584, %v585
    %v587 = vsel %vm254, %v564, 0.0
    %v588 = vadd.f32 %v586, %v587
    %v589 = vrot.slane %v588, 4
    %v590 = vadd.f32 %v588, %v589
    %v591 = vrot.slane %v590, 2
    %v592 = vadd.f32 %v590, %v591
    %v593 = vrot.slane %v592, 1
    %v594 = vadd.f32 %v592, %v593
    %v595 = vpack.c.bf16 %v117, %v117
    %v596 = vpack.c.bf16 %v579, %v579
    %v597 = vpack.c.bf16 %v594, %v594
    %v600 = vunpack.c.l.b16 %v596
    %v601 = vunpack.c.l.b16 %v597
    %v602 = vsel %vm341, %v601, %v600
    %v603 = vpack.c.b16 %v602, %v602
    %604 = vrot.lane.b32.xlu0 %v603, 16
    %v605 = vpop.permute.xlu0 %604
    %607 = vrot.lane.b32.xlu0 %v66, 80
    %v608 = vpop.permute.xlu0 %607
    %vm609 = vcmask 130048
    %v612 = vsel %vm609, %v595, %v605
    %vm613 = vcmask 654336
    %v615 = vsel %vm613, %v612, %v608
    %v616 = vld [vmem:[%s10] sm:$0xf]
    %v617 = vld [vmem:[%s10 + $0x4] sm:$0xf]
    %v618 = vld [vmem:[%s10 + $0x8] sm:$0xf]
    %v619 = vld [vmem:[%s10 + $0xc] sm:$0xf]
    %v620 = vld [vmem:[%s10 + $0x10] sm:$0xf]
    %v621 = vld [vmem:[%s10 + $0x14] sm:$0xf]
    %v622 = vld [vmem:[%s10 + $0x18] sm:$0xf]
    %v623 = vld [vmem:[%s10 + $0x1c] sm:$0xf]
    %v624 = vld [vmem:[%s10 + $0x20] sm:$0xf]
    %v625 = vld [vmem:[%s10 + $0x24] sm:$0xf]
    %v626 = vld [vmem:[%s10 + $0x28] sm:$0xf]
    %v627 = vld [vmem:[%s10 + $0x2c] sm:$0xf]
    %v628 = vld [vmem:[%s10 + $0x30] sm:$0xf]
    %v629 = vld [vmem:[%s10 + $0x34] sm:$0xf]
    %v630 = vld [vmem:[%s11] sm:$0x1]
    %v632 = vlaneseq
    %v633 = vshrl.u32 %v632, 7
    %v634 = vsub.s32 0, %v633
    %v635 = vrot.slane %v630, %v634
    %v651 = vunpack.c.l.b16 %v616
    %v652 = vunpack.c.l.b16 %v617
    %v653 = vunpack.c.l.b16 %v618
    %v654 = vunpack.c.l.b16 %v619
    %v655 = vunpack.c.l.b16 %v620
    %v656 = vunpack.c.l.b16 %v621
    %v657 = vunpack.c.l.b16 %v622
    %v658 = vunpack.c.l.b16 %v623
    %v659 = vunpack.c.l.b16 %v624
    %v660 = vunpack.c.l.b16 %v625
    %v661 = vunpack.c.l.b16 %v626
    %v662 = vunpack.c.l.b16 %v627
    %v663 = vunpack.c.l.b16 %v628
    %v664 = vunpack.c.l.b16 %v629
    %v665 = vpack.c.b16 %v652, %v651
    %v666 = vpack.c.b16 %v654, %v653
    %v667 = vpack.c.b16 %v656, %v655
    %v668 = vpack.c.b16 %v658, %v657
    %v669 = vpack.c.b16 %v660, %v659
    %v670 = vpack.c.b16 %v662, %v661
    %v671 = vpack.c.b16 %v664, %v663
    %vm679 = vcmask 916480
    %v680 = vsel %vm679, %v615, 0
    %682 = vmatprep.subr.bf16.mxu0 0
    %683 = vmatpush1.bf16.msra.mxu0 0
    %684 = vmatprep.subr.bf16.mxu0 0
    %685 = vmatpush1.bf16.msra.mxu0 %v671
    %686 = vmatprep.subr.bf16.mxu0 0
    %687 = vmatpush1.bf16.msra.mxu0 %v670
    %688 = vmatprep.subr.bf16.mxu0 0
    %689 = vmatpush1.bf16.msra.mxu0 %v669
    %690 = vmatprep.subr.bf16.mxu0 0
    %691 = vmatpush1.bf16.msra.mxu0 %v668
    %692 = vmatprep.subr.bf16.mxu0 0
    %693 = vmatpush1.bf16.msra.mxu0 %v667
    %694 = vmatprep.subr.bf16.mxu0 0
    %695 = vmatpush1.bf16.msra.mxu0 %v666
    %696 = vmatprep.subr.bf16.mxu0 0
    %697 = vmatpush1.bf16.msra.mxu0 %v665
    %698 = vmatprep.subr.bf16.mxu0 0
    %699 = vmatpush2.bf16.msra.mxu0 0
    %700 = vmatprep.subr.bf16.mxu0 0
    %701 = vmatpush2.bf16.msra.mxu0 0
    %702 = vmatprep.subr.bf16.mxu0 0
    %703 = vmatpush2.bf16.msra.mxu0 0
    %704 = vmatprep.subr.bf16.mxu0 0
    %705 = vmatpush2.bf16.msra.mxu0 0
    %706 = vmatprep.subr.bf16.mxu0 0
    %707 = vmatpush2.bf16.msra.mxu0 0
    %708 = vmatprep.subr.bf16.mxu0 0
    %709 = vmatpush2.bf16.msra.mxu0 0
    %710 = vmatprep.subr.bf16.mxu0 0
    %711 = vmatpush2.bf16.msra.mxu0 0
    %712 = vmatprep.subr.bf16.mxu0 0
    %713 = vmatpush2.bf16.msra.mxu0 0
    %714 = vmatprep.mubr.bf16.mxu0 0
    %715 = vmatmul.mubr.bf16.gmra.mxu0 %v680
    %v716 = vpop.f32.mrf.mxu0
    %v717 = vadd.f32 %v635, %v716
    %v718 = vpop.f32.mrf.mxu0
    %v719 = vpop.f32.mrf.mxu0
    %v720 = vpop.f32.mrf.mxu0
    %721 = vdwg.mxu0
    %v722 = vxor.u32 %v717, 2147483648
    %v723 = vmul.f32 %v722, 1.442695
    %v724 = vpow.pop %v723
    %v725 = vadd.f32 %v724, 1.0
    %v726 = vrcp.pop %v725
    %v727 = vmul.f32 1.0, %v726
    %v728 = vtanh.pop %v717
    %730 = vrot.lane.b32.xlu0 %v65, 32
    %v731 = vpop.permute.xlu0 %730
    %v733 = vmul.f32 %v727, %v731
    %735 = vrot.lane.b32.xlu0 %v728, 64
    %v736 = vpop.permute.xlu0 %735
    %v738 = vmul.f32 %v727, %v736
    %740 = vrot.lane.b32.xlu0 %v738, 32
    %v741 = vpop.permute.xlu0 %740
    %v743 = vadd.f32 %v733, %v741
    %v744 = vtanh.pop %v743
    %746 = vrot.lane.b32.xlu0 %v744, 64
    %v747 = vpop.permute.xlu0 %746
    %v749 = vmul.f32 %v727, %v747
    %751 = vrot.lane.b32.xlu0 %v749, 32
    %v752 = vpop.permute.xlu0 %751
    %vm754 = vcmask 254976
    %755 = vst.msk [vmem:[%s17] sm:$0x3] %vm754, %v752
    %757 = vrot.lane.b32.xlu0 %v743, 96
    %v758 = vpop.permute.xlu0 %757
    %760 = vst.msk [vmem:[%s18] sm:$0x3] %vm754, %v758
    %v761 = vpack.c.bf16 %v749, %v749
    %v762 = vld [vmem:[%s6] sm:$0xf]
    %v763 = vld [vmem:[%s6 + $0x4] sm:$0xf]
    %v764 = vld [vmem:[%s12] sm:$0xf]
    %v765 = vld [vmem:[%s12 + $0x4] sm:$0xf]
    %v766 = vld [vmem:[%s12 + $0x8] sm:$0xf]
    %v767 = vld [vmem:[%s12 + $0xc] sm:$0xf]
    %769 = vrot.lane.b32.xlu0 %v761, 32
    %v770 = vpop.permute.xlu0 %769
    %v775 = vunpack.c.l.b16 %v764
    %v776 = vunpack.c.l.b16 %v765
    %v777 = vunpack.c.l.b16 %v766
    %v778 = vunpack.c.l.b16 %v767
    %v779 = vpack.c.b16 %v776, %v775
    %v780 = vpack.c.b16 %v778, %v777
    %v784 = vsel %vm144, %v770, 0
    %786 = vmatprep.subr.bf16.mxu0 0
    %787 = vmatpush1.bf16.msra.mxu0 0
    %788 = vmatprep.subr.bf16.mxu0 0
    %789 = vmatpush1.bf16.msra.mxu0 0
    %790 = vmatprep.subr.bf16.mxu0 0
    %791 = vmatpush1.bf16.msra.mxu0 0
    %792 = vmatprep.subr.bf16.mxu0 0
    %793 = vmatpush1.bf16.msra.mxu0 0
    %794 = vmatprep.subr.bf16.mxu0 0
    %795 = vmatpush1.bf16.msra.mxu0 0
    %796 = vmatprep.subr.bf16.mxu0 0
    %797 = vmatpush1.bf16.msra.mxu0 0
    %798 = vmatprep.subr.bf16.mxu0 0
    %799 = vmatpush1.bf16.msra.mxu0 %v780
    %800 = vmatprep.subr.bf16.mxu0 0
    %801 = vmatpush1.bf16.msra.mxu0 %v779
    %802 = vmatprep.subr.bf16.mxu0 0
    %803 = vmatpush2.bf16.msra.mxu0 0
    %804 = vmatprep.subr.bf16.mxu0 0
    %805 = vmatpush2.bf16.msra.mxu0 0
    %806 = vmatprep.subr.bf16.mxu0 0
    %807 = vmatpush2.bf16.msra.mxu0 0
    %808 = vmatprep.subr.bf16.mxu0 0
    %809 = vmatpush2.bf16.msra.mxu0 0
    %810 = vmatprep.subr.bf16.mxu0 0
    %811 = vmatpush2.bf16.msra.mxu0 0
    %812 = vmatprep.subr.bf16.mxu0 0
    %813 = vmatpush2.bf16.msra.mxu0 0
    %814 = vmatprep.subr.bf16.mxu0 0
    %815 = vmatpush2.bf16.msra.mxu0 0
    %816 = vmatprep.subr.bf16.mxu0 0
    %817 = vmatpush2.bf16.msra.mxu0 0
    %818 = vmatprep.mubr.bf16.mxu0 0
    %819 = vmatmul.mubr.bf16.gmra.mxu0 %v784
    %v820 = vpop.f32.mrf.mxu0
    %v821 = vadd.f32 0.0, %v820
    %v822 = vpop.f32.mrf.mxu0
    %v823 = vpop.f32.mrf.mxu0
    %v824 = vpop.f32.mrf.mxu0
    %825 = vdwg.mxu0
    %v828 = vunpack.c.l.s4 1966171168
    %v829 = vunpack.c.0.s8 %v828
    %v830 = vlaneseq
    %v831 = vshrl.u32 %v830, 7
    %v832 = vsub.s32 %v829, %v831
    %v833 = vrot.slane %v821, %v832
    %v834 = vcombine.high %v833, %v833
    %v836 = vunpack.c.l.s4 1966171168
    %v837 = vunpack.c.0.s8 %v836
    %v838 = vlaneseq
    %v839 = vshrl.u32 %v838, 7
    %v840 = vsub.s32 %v837, %v839
    %v841 = vrot.slane %v833, %v840
    %v843 = vunpack.c.l.s4 1966171168
    %v844 = vunpack.c.0.s8 %v843
    %v845 = vlaneseq
    %v846 = vshrl.u32 %v845, 7
    %v847 = vsub.s32 %v844, %v846
    %v848 = vrot.slane %v834, %v847
    %v849 = vunpack.c.l.bf16 %v762
    %v850 = vunpack.c.l.bf16 %v763
    %v851 = vlaneseq
    %v852 = vshrl.u32 %v851, 7
    %v853 = vsub.s32 0, %v852
    %v854 = vrot.slane %v841, %v853
    %v855 = vlaneseq
    %v856 = vshrl.u32 %v855, 7
    %v857 = vsub.s32 0, %v856
    %v858 = vrot.slane %v848, %v857
    %v861 = vmul.f32 %v849, %v854
    %v862 = vmul.f32 %v850, %v858
    %v863 = vsel %vm144, %v861, 0.0
    %864 = vadd.xlane.f32.xlu0 %v863
    %v865 = vpop.xlane.xlu0 %864
    %v866 = vsel %vm144, %v862, 0.0
    %867 = vadd.xlane.f32.xlu0 %v866
    %v868 = vpop.xlane.xlu0 %867
    %v869 = vld [vmem:[%s7] sm:$0x3]
    %v871 = vlaneseq
    %v872 = vshrl.u32 %v871, 7
    %v873 = vsub.s32 0, %v872
    %v874 = vrot.slane %v869, %v873
    %876 = vbcast.lane.b32.xlu0 %v874, 256
    %v877 = vpop.permute.xlu0 %876
    %v878 = vlaneseq
    %v879 = vshrl.u32 %v878, 7
    %v880 = vsub.s32 1, %v879
    %v881 = vrot.slane %v869, %v880
    %883 = vbcast.lane.b32.xlu0 %v881, 256
    %v884 = vpop.permute.xlu0 %883
    %v887 = vadd.f32 %v865, %v877
    %v888 = vadd.f32 %v868, %v884
    %891 = vset.pattern.permute.xlu0 0
    %892 = vperm.xlu0 %891, %v887
    %v893 = vpop.permute.xlu0 %892
    %894 = vset.pattern.permute.xlu0 0
    %895 = vperm.xlu0 %894, %v888
    %v896 = vpop.permute.xlu0 %895
    %v897 = vlaneseq
    %v898 = vshrl.u32 %v897, 7
    %v899 = vsub.s32 %v284, %v898
    %v900 = vrot.slane %v893, %v899
    %v901 = vlaneseq
    %v902 = vshrl.u32 %v901, 7
    %v903 = vsub.s32 %v284, %v902
    %v904 = vrot.slane %v896, %v903
    %v905 = vsel %vm341, %v904, %v900
    %vm907 = vcmask 58368
    %v908 = vsel %vm907, %v905, -inf
    %909 = vmax.xlane.f32.xlu0 %v908
    %v910 = vpop.xlane.xlu0 %909
    %v912 = vlaneseq
    %v913 = vshrl.u32 %v912, 7
    %v914 = vsub.s32 0, %v913
    %v915 = vrot.slane %v910, %v914
    %v916 = vlaneseq
    %v917 = vshrl.u32 %v916, 7
    %v918 = vsub.s32 1, %v917
    %v919 = vrot.slane %v910, %v918
    %v922 = vsub.f32 %v887, %v915
    %v923 = vsub.f32 %v888, %v919
    %v924 = vmul.f32 %v922, 1.442695
    %v925 = vpow.pop %v924
    %v926 = vmul.f32 %v923, 1.442695
    %v927 = vpow.pop %v926
    %930 = vset.pattern.permute.xlu0 0
    %931 = vperm.xlu0 %930, %v925
    %v932 = vpop.permute.xlu0 %931
    %933 = vset.pattern.permute.xlu0 0
    %934 = vperm.xlu0 %933, %v927
    %v935 = vpop.permute.xlu0 %934
    %v936 = vlaneseq
    %v937 = vshrl.u32 %v936, 7
    %v938 = vsub.s32 %v284, %v937
    %v939 = vrot.slane %v932, %v938
    %v940 = vlaneseq
    %v941 = vshrl.u32 %v940, 7
    %v942 = vsub.s32 %v284, %v941
    %v943 = vrot.slane %v935, %v942
    %v944 = vsel %vm341, %v943, %v939
    %v946 = vsel %vm907, %v944, 0.0
    %947 = vadd.xlane.f32.xlu0 %v946
    %v948 = vpop.xlane.xlu0 %947
    %v950 = vlaneseq
    %v951 = vshrl.u32 %v950, 7
    %v952 = vsub.s32 0, %v951
    %v953 = vrot.slane %v948, %v952
    %v954 = vlaneseq
    %v955 = vshrl.u32 %v954, 7
    %v956 = vsub.s32 1, %v955
    %v957 = vrot.slane %v948, %v956
    %v960 = vrcp.pop %v953
    %v961 = vmul.f32 %v925, %v960
    %v962 = vrcp.pop %v957
    %v963 = vmul.f32 %v927, %v962
    %966 = vset.pattern.permute.xlu0 0
    %967 = vperm.xlu0 %966, %v961
    %v968 = vpop.permute.xlu0 %967
    %969 = vset.pattern.permute.xlu0 0
    %970 = vperm.xlu0 %969, %v963
    %v971 = vpop.permute.xlu0 %970
    %v972 = vlaneseq
    %v973 = vshrl.u32 %v972, 7
    %v974 = vsub.s32 %v284, %v973
    %v975 = vrot.slane %v968, %v974
    %v976 = vlaneseq
    %v977 = vshrl.u32 %v976, 7
    %v978 = vsub.s32 %v284, %v977
    %v979 = vrot.slane %v971, %v978
    %v980 = vsel %vm341, %v979, %v975
    %982 = vst.msk [vmem:[%s20] sm:$0x3] %vm907, %v980
    %v985 = vmul.f32 %v968, %v849
    %v986 = vmul.f32 %v971, %v850
    %v987 = vsel %vm144, %v985, 0.0
    %v988 = vrot.slane %v987, 4
    %v989 = vadd.f32 %v987, %v988
    %v990 = vrot.slane %v989, 2
    %v991 = vadd.f32 %v989, %v990
    %v992 = vrot.slane %v991, 1
    %v993 = vadd.f32 %v991, %v992
    %v994 = vsel %vm144, %v986, 0.0
    %v995 = vrot.slane %v994, 4
    %v996 = vadd.f32 %v994, %v995
    %v997 = vrot.slane %v996, 2
    %v998 = vadd.f32 %v996, %v997
    %v999 = vrot.slane %v998, 1
    %v1000 = vadd.f32 %v998, %v999
    %v1001 = vpack.c.bf16 %v993, %v993
    %v1002 = vpack.c.bf16 %v1000, %v1000
    %v1003 = vld [vmem:[%s13] sm:$0xf]
    %v1004 = vld [vmem:[%s13 + $0x4] sm:$0xf]
    %v1005 = vld [vmem:[%s13 + $0x8] sm:$0xf]
    %v1006 = vld [vmem:[%s13 + $0xc] sm:$0xf]
    %v1007 = vld [vmem:[%s14] sm:$0xf]
    %v1008 = vld [vmem:[%s14 + $0x4] sm:$0xf]
    %v1009 = vld [vmem:[%s14 + $0x8] sm:$0xf]
    %v1010 = vld [vmem:[%s14 + $0xc] sm:$0xf]
    %v1015 = vunpack.c.l.b16 %v1007
    %v1016 = vunpack.c.l.b16 %v1008
    %v1017 = vunpack.c.l.b16 %v1009
    %v1018 = vunpack.c.l.b16 %v1010
    %v1019 = vpack.c.b16 %v1016, %v1015
    %v1020 = vpack.c.b16 %v1018, %v1017
    %1023 = vmatprep.subr.bf16.mxu0 0
    %1024 = vmatpush1.bf16.msra.mxu0 0
    %1025 = vmatprep.subr.bf16.mxu0 0
    %1026 = vmatpush1.bf16.msra.mxu0 0
    %1027 = vmatprep.subr.bf16.mxu0 0
    %1028 = vmatpush1.bf16.msra.mxu0 0
    %1029 = vmatprep.subr.bf16.mxu0 0
    %1030 = vmatpush1.bf16.msra.mxu0 0
    %1031 = vmatprep.subr.bf16.mxu0 0
    %1032 = vmatpush1.bf16.msra.mxu0 0
    %1033 = vmatprep.subr.bf16.mxu0 0
    %1034 = vmatpush1.bf16.msra.mxu0 0
    %1035 = vmatprep.subr.bf16.mxu0 0
    %1036 = vmatpush1.bf16.msra.mxu0 %v1020
    %1037 = vmatprep.subr.bf16.mxu0 0
    %1038 = vmatpush1.bf16.msra.mxu0 %v1019
    %1039 = vmatprep.subr.bf16.mxu0 0
    %1040 = vmatpush2.bf16.msra.mxu0 0
    %1041 = vmatprep.subr.bf16.mxu0 0
    %1042 = vmatpush2.bf16.msra.mxu0 0
    %1043 = vmatprep.subr.bf16.mxu0 0
    %1044 = vmatpush2.bf16.msra.mxu0 0
    %1045 = vmatprep.subr.bf16.mxu0 0
    %1046 = vmatpush2.bf16.msra.mxu0 0
    %1047 = vmatprep.subr.bf16.mxu0 0
    %1048 = vmatpush2.bf16.msra.mxu0 0
    %1049 = vmatprep.subr.bf16.mxu0 0
    %1050 = vmatpush2.bf16.msra.mxu0 0
    %1051 = vmatprep.subr.bf16.mxu0 0
    %1052 = vmatpush2.bf16.msra.mxu0 0
    %1053 = vmatprep.subr.bf16.mxu0 0
    %1054 = vmatpush2.bf16.msra.mxu0 0
    %1055 = vmatprep.mubr.bf16.mxu0 0
    %1056 = vmatmul.mubr.bf16.gmra.mxu0 %v784
    %v1057 = vpop.f32.mrf.mxu0
    %v1058 = vadd.f32 0.0, %v1057
    %v1059 = vpop.f32.mrf.mxu0
    %v1060 = vpop.f32.mrf.mxu0
    %v1061 = vpop.f32.mrf.mxu0
    %1062 = vdwg.mxu0
    %v1065 = vunpack.c.l.b16 %v1001
    %v1066 = vunpack.c.l.b16 %v1002
    %v1067 = vsel %vm341, %v1066, %v1065
    %v1068 = vpack.c.b16 %v1067, %v1067
    %v1073 = vunpack.c.l.b16 %v1003
    %v1074 = vunpack.c.l.b16 %v1004
    %v1075 = vunpack.c.l.b16 %v1005
    %v1076 = vunpack.c.l.b16 %v1006
    %v1077 = vpack.c.b16 %v1074, %v1073
    %v1078 = vpack.c.b16 %v1076, %v1075
    %v1082 = vsel %vm144, %v1068, 0
    %1084 = vmatprep.subr.bf16.mxu0 0
    %1085 = vmatpush1.bf16.msra.mxu0 0
    %1086 = vmatprep.subr.bf16.mxu0 0
    %1087 = vmatpush1.bf16.msra.mxu0 0
    %1088 = vmatprep.subr.bf16.mxu0 0
    %1089 = vmatpush1.bf16.msra.mxu0 0
    %1090 = vmatprep.subr.bf16.mxu0 0
    %1091 = vmatpush1.bf16.msra.mxu0 0
    %1092 = vmatprep.subr.bf16.mxu0 0
    %1093 = vmatpush1.bf16.msra.mxu0 0
    %1094 = vmatprep.subr.bf16.mxu0 0
    %1095 = vmatpush1.bf16.msra.mxu0 0
    %1096 = vmatprep.subr.bf16.mxu0 0
    %1097 = vmatpush1.bf16.msra.mxu0 %v1078
    %1098 = vmatprep.subr.bf16.mxu0 0
    %1099 = vmatpush1.bf16.msra.mxu0 %v1077
    %1100 = vmatprep.subr.bf16.mxu0 0
    %1101 = vmatpush2.bf16.msra.mxu0 0
    %1102 = vmatprep.subr.bf16.mxu0 0
    %1103 = vmatpush2.bf16.msra.mxu0 0
    %1104 = vmatprep.subr.bf16.mxu0 0
    %1105 = vmatpush2.bf16.msra.mxu0 0
    %1106 = vmatprep.subr.bf16.mxu0 0
    %1107 = vmatpush2.bf16.msra.mxu0 0
    %1108 = vmatprep.subr.bf16.mxu0 0
    %1109 = vmatpush2.bf16.msra.mxu0 0
    %1110 = vmatprep.subr.bf16.mxu0 0
    %1111 = vmatpush2.bf16.msra.mxu0 0
    %1112 = vmatprep.subr.bf16.mxu0 0
    %1113 = vmatpush2.bf16.msra.mxu0 0
    %1114 = vmatprep.subr.bf16.mxu0 0
    %1115 = vmatpush2.bf16.msra.mxu0 0
    %1116 = vmatprep.mubr.bf16.mxu0 0
    %1117 = vmatmul.mubr.bf16.gmra.mxu0 %v1082
    %v1118 = vpop.f32.mrf.mxu0
    %v1119 = vadd.f32 %v1058, %v1118
    %v1120 = vpop.f32.mrf.mxu0
    %v1121 = vpop.f32.mrf.mxu0
    %v1122 = vpop.f32.mrf.mxu0
    %1123 = vdwg.mxu0
    %v1124 = vtanh.pop %v1119
    %1125 = vst.msk [vmem:[#allocation2] sm:$0x3] %vm754, %v1124
    %v1126 = vpack.c.bf16 %v1124, %v1124
    %v1127 = vld [vmem:[%s15] sm:$0xf]
    %v1128 = vld [vmem:[%s15 + $0x4] sm:$0xf]
    %v1129 = vld [vmem:[%s15 + $0x8] sm:$0xf]
    %v1130 = vld [vmem:[%s15 + $0xc] sm:$0xf]
    %v1135 = vunpack.c.l.b16 %v1127
    %v1136 = vunpack.c.l.b16 %v1128
    %v1137 = vunpack.c.l.b16 %v1129
    %v1138 = vunpack.c.l.b16 %v1130
    %v1139 = vpack.c.b16 %v1136, %v1135
    %v1140 = vpack.c.b16 %v1138, %v1137
    %v1144 = vsel %vm144, %v1126, 0
    %1146 = vmatprep.subr.bf16.mxu0 0
    %1147 = vmatpush1.bf16.msra.mxu0 0
    %1148 = vmatprep.subr.bf16.mxu0 0
    %1149 = vmatpush1.bf16.msra.mxu0 0
    %1150 = vmatprep.subr.bf16.mxu0 0
    %1151 = vmatpush1.bf16.msra.mxu0 0
    %1152 = vmatprep.subr.bf16.mxu0 0
    %1153 = vmatpush1.bf16.msra.mxu0 0
    %1154 = vmatprep.subr.bf16.mxu0 0
    %1155 = vmatpush1.bf16.msra.mxu0 0
    %1156 = vmatprep.subr.bf16.mxu0 0
    %1157 = vmatpush1.bf16.msra.mxu0 0
    %1158 = vmatprep.subr.bf16.mxu0 0
    %1159 = vmatpush1.bf16.msra.mxu0 %v1140
    %1160 = vmatprep.subr.bf16.mxu0 0
    %1161 = vmatpush1.bf16.msra.mxu0 %v1139
    %1162 = vmatprep.subr.bf16.mxu0 0
    %1163 = vmatpush2.bf16.msra.mxu0 0
    %1164 = vmatprep.subr.bf16.mxu0 0
    %1165 = vmatpush2.bf16.msra.mxu0 0
    %1166 = vmatprep.subr.bf16.mxu0 0
    %1167 = vmatpush2.bf16.msra.mxu0 0
    %1168 = vmatprep.subr.bf16.mxu0 0
    %1169 = vmatpush2.bf16.msra.mxu0 0
    %1170 = vmatprep.subr.bf16.mxu0 0
    %1171 = vmatpush2.bf16.msra.mxu0 0
    %1172 = vmatprep.subr.bf16.mxu0 0
    %1173 = vmatpush2.bf16.msra.mxu0 0
    %1174 = vmatprep.subr.bf16.mxu0 0
    %1175 = vmatpush2.bf16.msra.mxu0 0
    %1176 = vmatprep.subr.bf16.mxu0 0
    %1177 = vmatpush2.bf16.msra.mxu0 0
    %1178 = vmatprep.mubr.bf16.mxu0 0
    %1179 = vmatmul.mubr.bf16.gmra.mxu0 %v1144
    %v1180 = vpop.f32.mrf.mxu0
    %v1181 = vadd.f32 0.0, %v1180
    %v1182 = vpop.f32.mrf.mxu0
    %v1183 = vpop.f32.mrf.mxu0
    %v1184 = vpop.f32.mrf.mxu0
    %1185 = vdwg.mxu0
    %v1186 = vld [vmem:[%s2] sm:$0x3]
    %v1187 = vld [vmem:[%s2 + $0x2] sm:$0x3]
    %v1190 = vunpack.c.l.s4 1966171168
    %v1191 = vunpack.c.0.s8 %v1190
    %v1192 = vlaneseq
    %v1193 = vshrl.u32 %v1192, 7
    %v1194 = vsub.s32 %v1191, %v1193
    %v1195 = vrot.slane %v1181, %v1194
    %v1196 = vcombine.high %v1195, %v1195
    %v1198 = vunpack.c.l.s4 1966171168
    %v1199 = vunpack.c.0.s8 %v1198
    %v1200 = vlaneseq
    %v1201 = vshrl.u32 %v1200, 7
    %v1202 = vsub.s32 %v1199, %v1201
    %v1203 = vrot.slane %v1195, %v1202
    %v1205 = vunpack.c.l.s4 1966171168
    %v1206 = vunpack.c.0.s8 %v1205
    %v1207 = vlaneseq
    %v1208 = vshrl.u32 %v1207, 7
    %v1209 = vsub.s32 %v1206, %v1208
    %v1210 = vrot.slane %v1196, %v1209
    %v1211 = vunpack.c.l.bf16 %v1186
    %v1212 = vunpack.c.l.bf16 %v1187
    %v1213 = vlaneseq
    %v1214 = vshrl.u32 %v1213, 7
    %v1215 = vsub.s32 0, %v1214
    %v1216 = vrot.slane %v1203, %v1215
    %v1217 = vlaneseq
    %v1218 = vshrl.u32 %v1217, 7
    %v1219 = vsub.s32 0, %v1218
    %v1220 = vrot.slane %v1210, %v1219
    %v1223 = vmul.f32 %v1211, %v1216
    %v1224 = vmul.f32 %v1212, %v1220
    %v1225 = vsel %vm254, %v1223, 0.0
    %1226 = vadd.xlane.f32.xlu0 %v1225
    %v1227 = vpop.xlane.xlu0 %1226
    %v1228 = vsel %vm254, %v1224, 0.0
    %1229 = vadd.xlane.f32.xlu0 %v1228
    %v1230 = vpop.xlane.xlu0 %1229
    %v1233 = vlaneseq
    %v1234 = vshrl.u32 %v1233, 7
    %v1235 = vsub.s32 %v284, %v1234
    %v1236 = vrot.slane %v1227, %v1235
    %v1237 = vlaneseq
    %v1238 = vshrl.u32 %v1237, 7
    %v1239 = vsub.s32 %v284, %v1238
    %v1240 = vrot.slane %v1230, %v1239
    %v1241 = vsel %vm341, %v1240, %v1236
    %vm1243 = vcmask 25600
    %1244 = vst.msk [vmem:[%s21] sm:$0x3] %vm1243, %v1241
    %v1245 = vld [vmem:[%s3] sm:$0xf]
    %v1246 = vld [vmem:[%s3 + $0x4] sm:$0xf]
    %v1247 = vld [vmem:[%s3 + $0x8] sm:$0xf]
    %v1248 = vld [vmem:[%s3 + $0xc] sm:$0xf]
    %v1249 = vld [vmem:[%s3 + $0x10] sm:$0xf]
    %v1250 = vld [vmem:[%s3 + $0x14] sm:$0xf]
    %v1251 = vld [vmem:[%s16] sm:$0xf]
    %v1252 = vld [vmem:[%s16 + $0x4] sm:$0xf]
    %v1253 = vld [vmem:[%s16 + $0x8] sm:$0xf]
    %v1254 = vld [vmem:[%s16 + $0xc] sm:$0xf]
    %v1259 = vunpack.c.l.b16 %v1251
    %v1260 = vunpack.c.l.b16 %v1252
    %v1261 = vunpack.c.l.b16 %v1253
    %v1262 = vunpack.c.l.b16 %v1254
    %v1263 = vpack.c.b16 %v1260, %v1259
    %v1264 = vpack.c.b16 %v1262, %v1261
    %1267 = vmatprep.subr.bf16.mxu0 0
    %1268 = vmatpush1.bf16.msra.mxu0 0
    %1269 = vmatprep.subr.bf16.mxu0 0
    %1270 = vmatpush1.bf16.msra.mxu0 0
    %1271 = vmatprep.subr.bf16.mxu0 0
    %1272 = vmatpush1.bf16.msra.mxu0 0
    %1273 = vmatprep.subr.bf16.mxu0 0
    %1274 = vmatpush1.bf16.msra.mxu0 0
    %1275 = vmatprep.subr.bf16.mxu0 0
    %1276 = vmatpush1.bf16.msra.mxu0 0
    %1277 = vmatprep.subr.bf16.mxu0 0
    %1278 = vmatpush1.bf16.msra.mxu0 0
    %1279 = vmatprep.subr.bf16.mxu0 0
    %1280 = vmatpush1.bf16.msra.mxu0 %v1264
    %1281 = vmatprep.subr.bf16.mxu0 0
    %1282 = vmatpush1.bf16.msra.mxu0 %v1263
    %1283 = vmatprep.subr.bf16.mxu0 0
    %1284 = vmatpush2.bf16.msra.mxu0 0
    %1285 = vmatprep.subr.bf16.mxu0 0
    %1286 = vmatpush2.bf16.msra.mxu0 0
    %1287 = vmatprep.subr.bf16.mxu0 0
    %1288 = vmatpush2.bf16.msra.mxu0 0
    %1289 = vmatprep.subr.bf16.mxu0 0
    %1290 = vmatpush2.bf16.msra.mxu0 0
    %1291 = vmatprep.subr.bf16.mxu0 0
    %1292 = vmatpush2.bf16.msra.mxu0 0
    %1293 = vmatprep.subr.bf16.mxu0 0
    %1294 = vmatpush2.bf16.msra.mxu0 0
    %1295 = vmatprep.subr.bf16.mxu0 0
    %1296 = vmatpush2.bf16.msra.mxu0 0
    %1297 = vmatprep.subr.bf16.mxu0 0
    %1298 = vmatpush2.bf16.msra.mxu0 0
    %1299 = vmatprep.mubr.bf16.mxu0 0
    %1300 = vmatmul.mubr.bf16.gmra.mxu0 %v1144
    %v1301 = vpop.f32.mrf.mxu0
    %v1302 = vadd.f32 0.0, %v1301
    %v1303 = vpop.f32.mrf.mxu0
    %v1304 = vpop.f32.mrf.mxu0
    %v1305 = vpop.f32.mrf.mxu0
    %1306 = vdwg.mxu0
    %v1309 = vunpack.c.l.s4 1966171168
    %v1310 = vunpack.c.0.s8 %v1309
    %v1311 = vlaneseq
    %v1312 = vshrl.u32 %v1311, 7
    %v1313 = vsub.s32 %v1310, %v1312
    %v1314 = vrot.slane %v1302, %v1313
    %v1315 = vcombine.high %v1314, %v1314
    %v1317 = vunpack.c.l.s4 1966171168
    %v1318 = vunpack.c.0.s8 %v1317
    %v1319 = vlaneseq
    %v1320 = vshrl.u32 %v1319, 7
    %v1321 = vsub.s32 %v1318, %v1320
    %v1322 = vrot.slane %v1314, %v1321
    %v1324 = vunpack.c.l.s4 1966171168
    %v1325 = vunpack.c.0.s8 %v1324
    %v1326 = vlaneseq
    %v1327 = vshrl.u32 %v1326, 7
    %v1328 = vsub.s32 %v1325, %v1327
    %v1329 = vrot.slane %v1315, %v1328
    %v1330 = vunpack.c.l.bf16 %v1245
    %v1331 = vunpack.c.l.bf16 %v1246
    %v1332 = vunpack.c.l.bf16 %v1247
    %v1333 = vunpack.c.l.bf16 %v1248
    %v1334 = vunpack.c.l.bf16 %v1249
    %v1335 = vunpack.c.l.bf16 %v1250
    %v1336 = vlaneseq
    %v1337 = vshrl.u32 %v1336, 7
    %v1338 = vsub.s32 0, %v1337
    %v1339 = vrot.slane %v1322, %v1338
    %v1340 = vlaneseq
    %v1341 = vshrl.u32 %v1340, 7
    %v1342 = vsub.s32 0, %v1341
    %v1343 = vrot.slane %v1329, %v1342
    %v1346 = vmul.f32 %v1330, %v1339
    %v1347 = vmul.f32 %v1331, %v1339
    %v1348 = vmul.f32 %v1332, %v1339
    %v1349 = vmul.f32 %v1333, %v1343
    %v1350 = vmul.f32 %v1334, %v1343
    %v1351 = vmul.f32 %v1335, %v1343
    %v1352 = vsel %vm144, %v1346, 0.0
    %1353 = vadd.xlane.f32.xlu0 %v1352
    %v1354 = vpop.xlane.xlu0 %1353
    %v1355 = vsel %vm144, %v1347, 0.0
    %1356 = vadd.xlane.f32.xlu0 %v1355
    %v1357 = vpop.xlane.xlu0 %1356
    %v1358 = vsel %vm144, %v1348, 0.0
    %1359 = vadd.xlane.f32.xlu0 %v1358
    %v1360 = vpop.xlane.xlu0 %1359
    %v1361 = vsel %vm144, %v1349, 0.0
    %1362 = vadd.xlane.f32.xlu0 %v1361
    %v1363 = vpop.xlane.xlu0 %1362
    %v1364 = vsel %vm144, %v1350, 0.0
    %1365 = vadd.xlane.f32.xlu0 %v1364
    %v1366 = vpop.xlane.xlu0 %1365
    %v1367 = vsel %vm144, %v1351, 0.0
    %1368 = vadd.xlane.f32.xlu0 %v1367
    %v1369 = vpop.xlane.xlu0 %1368
    %v1376 = vlaneseq
    %v1377 = vshrl.u32 %v1376, 7
    %v1378 = vsub.s32 %v284, %v1377
    %v1379 = vrot.slane %v1354, %v1378
    %v1380 = vlaneseq
    %v1381 = vshrl.u32 %v1380, 7
    %v1382 = vsub.s32 %v289, %v1381
    %v1383 = vrot.slane %v1357, %v1382
    %v1384 = vsel %vm294, %v1383, %v1379
    %v1385 = vlaneseq
    %v1386 = vshrl.u32 %v1385, 7
    %v1387 = vsub.s32 %v296, %v1386
    %v1388 = vrot.slane %v1360, %v1387
    %v1389 = vsel %vm301, %v1388, %v1384
    %v1390 = vlaneseq
    %v1391 = vshrl.u32 %v1390, 7
    %v1392 = vsub.s32 %v284, %v1391
    %v1393 = vrot.slane %v1363, %v1392
    %v1394 = vlaneseq
    %v1395 = vshrl.u32 %v1394, 7
    %v1396 = vsub.s32 %v289, %v1395
    %v1397 = vrot.slane %v1366, %v1396
    %v1398 = vsel %vm294, %v1397, %v1393
    %v1399 = vlaneseq
    %v1400 = vshrl.u32 %v1399, 7
    %v1401 = vsub.s32 %v296, %v1400
    %v1402 = vrot.slane %v1369, %v1401
    %v1403 = vsel %vm301, %v1402, %v1398
    %vm1406 = vcmask 188416
    %1407 = vst.msk [vmem:[%s22] sm:$0x1] %vm1406, %v1389
    %1408 = vst.msk [vmem:[%s22 + $0x4] sm:$0x1] %vm1406, %v1403
    %s1409 = scalar_lea.vmem %s16, 16
    %v1410 = vld [vmem:[%s1409] sm:$0xf]
    %v1411 = vld [vmem:[%s1409 + $0x4] sm:$0xf]
    %v1412 = vld [vmem:[%s1409 + $0x8] sm:$0xf]
    %v1413 = vld [vmem:[%s1409 + $0xc] sm:$0xf]
    %v1418 = vunpack.c.l.b16 %v1410
    %v1419 = vunpack.c.l.b16 %v1411
    %v1420 = vunpack.c.l.b16 %v1412
    %v1421 = vunpack.c.l.b16 %v1413
    %v1422 = vpack.c.b16 %v1419, %v1418
    %v1423 = vpack.c.b16 %v1421, %v1420
    %1426 = vmatprep.subr.bf16.mxu0 0
    %1427 = vmatpush1.bf16.msra.mxu0 0
    %1428 = vmatprep.subr.bf16.mxu0 0
    %1429 = vmatpush1.bf16.msra.mxu0 0
    %1430 = vmatprep.subr.bf16.mxu0 0
    %1431 = vmatpush1.bf16.msra.mxu0 0
    %1432 = vmatprep.subr.bf16.mxu0 0
    %1433 = vmatpush1.bf16.msra.mxu0 0
    %1434 = vmatprep.subr.bf16.mxu0 0
    %1435 = vmatpush1.bf16.msra.mxu0 0
    %1436 = vmatprep.subr.bf16.mxu0 0
    %1437 = vmatpush1.bf16.msra.mxu0 0
    %1438 = vmatprep.subr.bf16.mxu0 0
    %1439 = vmatpush1.bf16.msra.mxu0 %v1423
    %1440 = vmatprep.subr.bf16.mxu0 0
    %1441 = vmatpush1.bf16.msra.mxu0 %v1422
    %1442 = vmatprep.subr.bf16.mxu0 0
    %1443 = vmatpush2.bf16.msra.mxu0 0
    %1444 = vmatprep.subr.bf16.mxu0 0
    %1445 = vmatpush2.bf16.msra.mxu0 0
    %1446 = vmatprep.subr.bf16.mxu0 0
    %1447 = vmatpush2.bf16.msra.mxu0 0
    %1448 = vmatprep.subr.bf16.mxu0 0
    %1449 = vmatpush2.bf16.msra.mxu0 0
    %1450 = vmatprep.subr.bf16.mxu0 0
    %1451 = vmatpush2.bf16.msra.mxu0 0
    %1452 = vmatprep.subr.bf16.mxu0 0
    %1453 = vmatpush2.bf16.msra.mxu0 0
    %1454 = vmatprep.subr.bf16.mxu0 0
    %1455 = vmatpush2.bf16.msra.mxu0 0
    %1456 = vmatprep.subr.bf16.mxu0 0
    %1457 = vmatpush2.bf16.msra.mxu0 0
    %1458 = vmatprep.mubr.bf16.mxu0 0
    %1459 = vmatmul.mubr.bf16.gmra.mxu0 %v1144
    %v1460 = vpop.f32.mrf.mxu0
    %v1461 = vadd.f32 0.0, %v1460
    %v1462 = vpop.f32.mrf.mxu0
    %v1463 = vpop.f32.mrf.mxu0
    %v1464 = vpop.f32.mrf.mxu0
    %1465 = vdwg.mxu0
    %v1468 = vunpack.c.l.s4 1966171168
    %v1469 = vunpack.c.0.s8 %v1468
    %v1470 = vlaneseq
    %v1471 = vshrl.u32 %v1470, 7
    %v1472 = vsub.s32 %v1469, %v1471
    %v1473 = vrot.slane %v1461, %v1472
    %v1474 = vcombine.high %v1473, %v1473
    %v1476 = vunpack.c.l.s4 1966171168
    %v1477 = vunpack.c.0.s8 %v1476
    %v1478 = vlaneseq
    %v1479 = vshrl.u32 %v1478, 7
    %v1480 = vsub.s32 %v1477, %v1479
    %v1481 = vrot.slane %v1473, %v1480
    %v1483 = vunpack.c.l.s4 1966171168
    %v1484 = vunpack.c.0.s8 %v1483
    %v1485 = vlaneseq
    %v1486 = vshrl.u32 %v1485, 7
    %v1487 = vsub.s32 %v1484, %v1486
    %v1488 = vrot.slane %v1474, %v1487
    %v1489 = vlaneseq
    %v1490 = vshrl.u32 %v1489, 7
    %v1491 = vsub.s32 0, %v1490
    %v1492 = vrot.slane %v1481, %v1491
    %v1493 = vlaneseq
    %v1494 = vshrl.u32 %v1493, 7
    %v1495 = vsub.s32 0, %v1494
    %v1496 = vrot.slane %v1488, %v1495
    %v1499 = vmul.f32 %v1330, %v1492
    %v1500 = vmul.f32 %v1331, %v1492
    %v1501 = vmul.f32 %v1332, %v1492
    %v1502 = vmul.f32 %v1333, %v1496
    %v1503 = vmul.f32 %v1334, %v1496
    %v1504 = vmul.f32 %v1335, %v1496
    %v1505 = vsel %vm144, %v1499, 0.0
    %1506 = vadd.xlane.f32.xlu0 %v1505
    %v1507 = vpop.xlane.xlu0 %1506
    %v1508 = vsel %vm144, %v1500, 0.0
    %1509 = vadd.xlane.f32.xlu0 %v1508
    %v1510 = vpop.xlane.xlu0 %1509
    %v1511 = vsel %vm144, %v1501, 0.0
    %1512 = vadd.xlane.f32.xlu0 %v1511
    %v1513 = vpop.xlane.xlu0 %1512
    %v1514 = vsel %vm144, %v1502, 0.0
    %1515 = vadd.xlane.f32.xlu0 %v1514
    %v1516 = vpop.xlane.xlu0 %1515
    %v1517 = vsel %vm144, %v1503, 0.0
    %1518 = vadd.xlane.f32.xlu0 %v1517
    %v1519 = vpop.xlane.xlu0 %1518
    %v1520 = vsel %vm144, %v1504, 0.0
    %1521 = vadd.xlane.f32.xlu0 %v1520
    %v1522 = vpop.xlane.xlu0 %1521
    %v1529 = vlaneseq
    %v1530 = vshrl.u32 %v1529, 7
    %v1531 = vsub.s32 %v284, %v1530
    %v1532 = vrot.slane %v1507, %v1531
    %v1533 = vlaneseq
    %v1534 = vshrl.u32 %v1533, 7
    %v1535 = vsub.s32 %v289, %v1534
    %v1536 = vrot.slane %v1510, %v1535
    %v1537 = vsel %vm294, %v1536, %v1532
    %v1538 = vlaneseq
    %v1539 = vshrl.u32 %v1538, 7
    %v1540 = vsub.s32 %v296, %v1539
    %v1541 = vrot.slane %v1513, %v1540
    %v1542 = vsel %vm301, %v1541, %v1537
    %v1543 = vlaneseq
    %v1544 = vshrl.u32 %v1543, 7
    %v1545 = vsub.s32 %v284, %v1544
    %v1546 = vrot.slane %v1516, %v1545
    %v1547 = vlaneseq
    %v1548 = vshrl.u32 %v1547, 7
    %v1549 = vsub.s32 %v289, %v1548
    %v1550 = vrot.slane %v1519, %v1549
    %v1551 = vsel %vm294, %v1550, %v1546
    %v1552 = vlaneseq
    %v1553 = vshrl.u32 %v1552, 7
    %v1554 = vsub.s32 %v296, %v1553
    %v1555 = vrot.slane %v1522, %v1554
    %v1556 = vsel %vm301, %v1555, %v1551
    %1559 = vst.msk [vmem:[%s22 + $0x1] sm:$0x1] %vm1406, %v1542
    %1560 = vst.msk [vmem:[%s22 + $0x5] sm:$0x1] %vm1406, %v1556
    %s1561 = scalar_lea.vmem %s16, 32
    %v1562 = vld [vmem:[%s1561] sm:$0xf]
    %v1563 = vld [vmem:[%s1561 + $0x4] sm:$0xf]
    %v1564 = vld [vmem:[%s1561 + $0x8] sm:$0xf]
    %v1565 = vld [vmem:[%s1561 + $0xc] sm:$0xf]
    %v1570 = vunpack.c.l.b16 %v1562
    %v1571 = vunpack.c.l.b16 %v1563
    %v1572 = vunpack.c.l.b16 %v1564
    %v1573 = vunpack.c.l.b16 %v1565
    %v1574 = vpack.c.b16 %v1571, %v1570
    %v1575 = vpack.c.b16 %v1573, %v1572
    %1578 = vmatprep.subr.bf16.mxu0 0
    %1579 = vmatpush1.bf16.msra.mxu0 0
    %1580 = vmatprep.subr.bf16.mxu0 0
    %1581 = vmatpush1.bf16.msra.mxu0 0
    %1582 = vmatprep.subr.bf16.mxu0 0
    %1583 = vmatpush1.bf16.msra.mxu0 0
    %1584 = vmatprep.subr.bf16.mxu0 0
    %1585 = vmatpush1.bf16.msra.mxu0 0
    %1586 = vmatprep.subr.bf16.mxu0 0
    %1587 = vmatpush1.bf16.msra.mxu0 0
    %1588 = vmatprep.subr.bf16.mxu0 0
    %1589 = vmatpush1.bf16.msra.mxu0 0
    %1590 = vmatprep.subr.bf16.mxu0 0
    %1591 = vmatpush1.bf16.msra.mxu0 %v1575
    %1592 = vmatprep.subr.bf16.mxu0 0
    %1593 = vmatpush1.bf16.msra.mxu0 %v1574
    %1594 = vmatprep.subr.bf16.mxu0 0
    %1595 = vmatpush2.bf16.msra.mxu0 0
    %1596 = vmatprep.subr.bf16.mxu0 0
    %1597 = vmatpush2.bf16.msra.mxu0 0
    %1598 = vmatprep.subr.bf16.mxu0 0
    %1599 = vmatpush2.bf16.msra.mxu0 0
    %1600 = vmatprep.subr.bf16.mxu0 0
    %1601 = vmatpush2.bf16.msra.mxu0 0
    %1602 = vmatprep.subr.bf16.mxu0 0
    %1603 = vmatpush2.bf16.msra.mxu0 0
    %1604 = vmatprep.subr.bf16.mxu0 0
    %1605 = vmatpush2.bf16.msra.mxu0 0
    %1606 = vmatprep.subr.bf16.mxu0 0
    %1607 = vmatpush2.bf16.msra.mxu0 0
    %1608 = vmatprep.subr.bf16.mxu0 0
    %1609 = vmatpush2.bf16.msra.mxu0 0
    %1610 = vmatprep.mubr.bf16.mxu0 0
    %1611 = vmatmul.mubr.bf16.gmra.mxu0 %v1144
    %v1612 = vpop.f32.mrf.mxu0
    %v1613 = vadd.f32 0.0, %v1612
    %v1614 = vpop.f32.mrf.mxu0
    %v1615 = vpop.f32.mrf.mxu0
    %v1616 = vpop.f32.mrf.mxu0
    %1617 = vdwg.mxu0
    %v1620 = vunpack.c.l.s4 1966171168
    %v1621 = vunpack.c.0.s8 %v1620
    %v1622 = vlaneseq
    %v1623 = vshrl.u32 %v1622, 7
    %v1624 = vsub.s32 %v1621, %v1623
    %v1625 = vrot.slane %v1613, %v1624
    %v1626 = vcombine.high %v1625, %v1625
    %v1628 = vunpack.c.l.s4 1966171168
    %v1629 = vunpack.c.0.s8 %v1628
    %v1630 = vlaneseq
    %v1631 = vshrl.u32 %v1630, 7
    %v1632 = vsub.s32 %v1629, %v1631
    %v1633 = vrot.slane %v1625, %v1632
    %v1635 = vunpack.c.l.s4 1966171168
    %v1636 = vunpack.c.0.s8 %v1635
    %v1637 = vlaneseq
    %v1638 = vshrl.u32 %v1637, 7
    %v1639 = vsub.s32 %v1636, %v1638
    %v1640 = vrot.slane %v1626, %v1639
    %v1641 = vlaneseq
    %v1642 = vshrl.u32 %v1641, 7
    %v1643 = vsub.s32 0, %v1642
    %v1644 = vrot.slane %v1633, %v1643
    %v1645 = vlaneseq
    %v1646 = vshrl.u32 %v1645, 7
    %v1647 = vsub.s32 0, %v1646
    %v1648 = vrot.slane %v1640, %v1647
    %v1651 = vmul.f32 %v1330, %v1644
    %v1652 = vmul.f32 %v1331, %v1644
    %v1653 = vmul.f32 %v1332, %v1644
    %v1654 = vmul.f32 %v1333, %v1648
    %v1655 = vmul.f32 %v1334, %v1648
    %v1656 = vmul.f32 %v1335, %v1648
    %v1657 = vsel %vm144, %v1651, 0.0
    %1658 = vadd.xlane.f32.xlu0 %v1657
    %v1659 = vpop.xlane.xlu0 %1658
    %v1660 = vsel %vm144, %v1652, 0.0
    %1661 = vadd.xlane.f32.xlu0 %v1660
    %v1662 = vpop.xlane.xlu0 %1661
    %v1663 = vsel %vm144, %v1653, 0.0
    %1664 = vadd.xlane.f32.xlu0 %v1663
    %v1665 = vpop.xlane.xlu0 %1664
    %v1666 = vsel %vm144, %v1654, 0.0
    %1667 = vadd.xlane.f32.xlu0 %v1666
    %v1668 = vpop.xlane.xlu0 %1667
    %v1669 = vsel %vm144, %v1655, 0.0
    %1670 = vadd.xlane.f32.xlu0 %v1669
    %v1671 = vpop.xlane.xlu0 %1670
    %v1672 = vsel %vm144, %v1656, 0.0
    %1673 = vadd.xlane.f32.xlu0 %v1672
    %v1674 = vpop.xlane.xlu0 %1673
    %v1681 = vlaneseq
    %v1682 = vshrl.u32 %v1681, 7
    %v1683 = vsub.s32 %v284, %v1682
    %v1684 = vrot.slane %v1659, %v1683
    %v1685 = vlaneseq
    %v1686 = vshrl.u32 %v1685, 7
    %v1687 = vsub.s32 %v289, %v1686
    %v1688 = vrot.slane %v1662, %v1687
    %v1689 = vsel %vm294, %v1688, %v1684
    %v1690 = vlaneseq
    %v1691 = vshrl.u32 %v1690, 7
    %v1692 = vsub.s32 %v296, %v1691
    %v1693 = vrot.slane %v1665, %v1692
    %v1694 = vsel %vm301, %v1693, %v1689
    %v1695 = vlaneseq
    %v1696 = vshrl.u32 %v1695, 7
    %v1697 = vsub.s32 %v284, %v1696
    %v1698 = vrot.slane %v1668, %v1697
    %v1699 = vlaneseq
    %v1700 = vshrl.u32 %v1699, 7
    %v1701 = vsub.s32 %v289, %v1700
    %v1702 = vrot.slane %v1671, %v1701
    %v1703 = vsel %vm294, %v1702, %v1698
    %v1704 = vlaneseq
    %v1705 = vshrl.u32 %v1704, 7
    %v1706 = vsub.s32 %v296, %v1705
    %v1707 = vrot.slane %v1674, %v1706
    %v1708 = vsel %vm301, %v1707, %v1703
    %1711 = vst.msk [vmem:[%s22 + $0x2] sm:$0x1] %vm1406, %v1694
    %1712 = vst.msk [vmem:[%s22 + $0x6] sm:$0x1] %vm1406, %v1708
    // Predicated region
    $region70: #{configuration_lxmert_decoder_forward.1} parent=1 // pred_check
      _
    $region71: #{configuration_lxmert_decoder_forward.1} parent=1 // pred_check_branch
      %1714 = sbr.rel (0) target = $region73
    $region72: #{configuration_lxmert_decoder_forward.1} parent=1 // pred_region
      _
    $region73: #{configuration_lxmert_decoder_forward.1} parent=1 // pred_fallthru
      _
    // Predicated region
    $region74: #{configuration_lxmert_decoder_forward.1} parent=1 // pred_check
      _
    $region75: #{configuration_lxmert_decoder_forward.1} parent=1 // pred_check_branch
      %1716 = sbr.rel (0) target = $region77
    $region76: #{configuration_lxmert_decoder_forward.1} parent=1 // pred_region
      _
    $region77: #{configuration_lxmert_decoder_forward.1} parent=1 // pred_fallthru
      _
    // Predicated region
    $region78: #{configuration_lxmert_decoder_forward.1} parent=1 // pred_check
      _
    $region79: #{configuration_lxmert_decoder_forward.1} parent=1 // pred_check_branch
      %1718 = sbr.rel (0) target = $region81
    $region80: #{configuration_lxmert_decoder_forward.1} parent=1 // pred_region
      %s1720 = ssub.s32 32, 32
      %1721 = vsyncadd [#allocation3], %s1720
      %s1723 = sshll.u32 [#allocation2], 4
      %s1724 = int_to_ptr.vmem [resolvable:$true] %s1723
      %1726 = dma.vmem_to_hbm [thread:$0]  %s1724, 32, %s19, [#allocation3]
    $region81: #{configuration_lxmert_decoder_forward.1} parent=1 // pred_fallthru
      _
    // Predicated region
    $region82: #{configuration_lxmert_decoder_forward.1} parent=1 // pred_check
      _
    $region83: #{configuration_lxmert_decoder_forward.1} parent=1 // pred_check_branch
      %1728 = sbr.rel (0) target = $region85
    $region84: #{configuration_lxmert_decoder_forward.1} parent=1 // pred_region
      _
    $region85: #{configuration_lxmert_decoder_forward.1} parent=1 // pred_fallthru
      _
    // Predicated region
    $region86: #{configuration_lxmert_decoder_forward.1} parent=1 // pred_check
      _
    $region87: #{configuration_lxmert_decoder_forward.1} parent=1 // pred_check_branch
      %1730 = sbr.rel (0) target = $region89
    $region88: #{configuration_lxmert_decoder_forward.1} parent=1 // pred_region
      _
    $region89: #{configuration_lxmert_decoder_forward.1} parent=1 // pred_fallthru
      _
    // Predicated region
    $region90: #{configuration_lxmert_decoder_forward.1} parent=1 // pred_check
      _
    $region91: #{configuration_lxmert_decoder_forward.1} parent=1 // pred_check_branch
      %1732 = sbr.rel (0) target = $region93
    $region92: #{configuration_lxmert_decoder_forward.1} parent=1 // pred_region
      _
    $region93: #{configuration_lxmert_decoder_forward.1} parent=1 // pred_fallthru
      _
    // Predicated region
    $region94: #{configuration_lxmert_decoder_forward.1} parent=1 // pred_check
      _
    $region95: #{configuration_lxmert_decoder_forward.1} parent=1 // pred_check_branch
      %1734 = sbr.rel (0) target = $region97
    $region96: #{configuration_lxmert_decoder_forward.1} parent=1 // pred_region
      _
    $region97: #{configuration_lxmert_decoder_forward.1} parent=1 // pred_fallthru
      _
    // Predicated region
    $region98: #{configuration_lxmert_decoder_forward.1} parent=1 // pred_check
      _
    $region99: #{configuration_lxmert_decoder_forward.1} parent=1 // pred_check_branch
      %1736 = sbr.rel (0) target = $region101
    $region100: #{configuration_lxmert_decoder_forward.1} parent=1 // pred_region
      _
    $region101: #{configuration_lxmert_decoder_forward.1} parent=1 // pred_fallthru
      _
    // Predicated region
    $region102: #{configuration_lxmert_decoder_forward.1} parent=1 // pred_check
      _
    $region103: #{configuration_lxmert_decoder_forward.1} parent=1 // pred_check_branch
      %1738 = sbr.rel (0) target = $region105
    $region104: #{configuration_lxmert_decoder_forward.1} parent=1 // pred_region
      %1739 = dma.done [#allocation3], 32
    $region105: #{configuration_lxmert_decoder_forward.1} parent=1 // pred_fallthru
      _
    // Predicated region
    $region106: #{configuration_lxmert_decoder_forward.1} parent=1 // pred_check
      _
    $region107: #{configuration_lxmert_decoder_forward.1} parent=1 // pred_check_branch
      %1741 = sbr.rel (0) target = $region109
    $region108: #{configuration_lxmert_decoder_forward.1} parent=1 // pred_region
      _
    $region109: #{configuration_lxmert_decoder_forward.1} parent=1 // pred_fallthru
      _
    // Predicated region
    $region110: #{configuration_lxmert_decoder_forward.1} parent=1 // pred_check
      _
    $region111: #{configuration_lxmert_decoder_forward.1} parent=1 // pred_check_branch
      %1743 = sbr.rel (0) target = $region113
    $region112: #{configuration_lxmert_decoder_forward.1} parent=1 // pred_region
      _
    $region113: #{configuration_lxmert_decoder_forward.1} parent=1 // pred_fallthru
      _
    // Predicated region
    $region114: #{configuration_lxmert_decoder_forward.1} parent=1 // pred_check
      _
    $region115: #{configuration_lxmert_decoder_forward.1} parent=1 // pred_check_branch
      %1745 = sbr.rel (0) target = $region117
    $region116: #{configuration_lxmert_decoder_forward.1} parent=1 // pred_region
      _
    $region117: #{configuration_lxmert_decoder_forward.1} parent=1 // pred_fallthru
      _
    %1746 = vsyncpa [#allocation3], 1

</llo_original>
